<compile_context>
chip_gen: v7x
topology: tpu7x:2x2x1
jax: 0.10.0
libtpu: 0.0.40
codegen_flags: <defaults>
</compile_context>

<pallas_src>
import functools

import jax
import jax.numpy as jnp
from jax.experimental import pallas as pl
from jax.experimental.pallas import tpu as pltpu

LN_EPS = 1e-5


def _layernorm(x, g, b):
    # fp32 LayerNorm (matches the LayerNorm subclass that upcasts to float32).
    mu = jnp.mean(x, axis=-1, keepdims=True)
    var = jnp.mean((x - mu) ** 2, axis=-1, keepdims=True)
    return (x - mu) * jax.lax.rsqrt(var + LN_EPS) * g + b


def _softmax_recip(d):
    # EUP approx reciprocal + one Newton-Raphson step (near-fp32 accuracy).
    r = pl.reciprocal(d, approx=True)
    return r * (2.0 - d * r)


def _fused_block_kernel(nb, seq_len, num_heads, head_dim, compute_dtype,
                        x_ref,
                        ln1_g_ref, ln1_b_ref, w_in_ref, b_in_ref,
                        w_out_ref, b_out_ref, ln2_g_ref, ln2_b_ref,
                        w_fc_ref, b_fc_ref, w_proj_ref, b_proj_ref,
                        y_ref):
    """grid = (batch_blocks, layers); one step == one residual block on one
    batch block.  The (nb, L, C) activation lives in the output ref, whose
    block index is constant across the (innermost, 'arbitrary') layer axis, so
    it stays resident in VMEM for all layers and is written to HBM once per
    batch block."""
    layer = pl.program_id(1)
    cd = compute_dtype
    C = num_heads * head_dim
    NL = nb * seq_len

    # Seed the resident activation once per batch block (output blocks are
    # never initialised from HBM by the pipeline).
    @pl.when(layer == 0)
    def _seed():
        y_ref[...] = x_ref[...]

    x = y_ref[...].reshape(NL, C).astype(jnp.float32)        # residual stream (fp32)

    # ---------------- ln_1 + multi-head self-attention ----------------------
    xn = _layernorm(x, ln1_g_ref[0], ln1_b_ref[0]).astype(cd)

    # Fused, lane-dense QKV projection (attention scale pre-folded into Q cols).
    qkv = jnp.dot(xn, w_in_ref[0].astype(cd),
                  preferred_element_type=jnp.float32) + b_in_ref[0]   # (NL, 3C) fp32

    w_out_full = w_out_ref[0].astype(cd)                      # (C, C) lane-dense

    # Small per-head attention core (score/softmax/PV) over lane slices of the
    # fused QKV output; each iteration is an n-batched einsum.  At the toy test
    # size this is correctness-only; at real widths heads move to the grid.
    attn = jnp.zeros((NL, C), jnp.float32)
    for h in range(num_heads):
        lo = h * head_dim
        q = qkv[:, 0 * C + lo: 0 * C + lo + head_dim]
        k = qkv[:, 1 * C + lo: 1 * C + lo + head_dim]
        v = qkv[:, 2 * C + lo: 2 * C + lo + head_dim]
        # (NL, hd) -> (nb, L, hd): pure major-dim split, no lane relayout.
        q3 = q.reshape(nb, seq_len, head_dim).astype(cd)
        k3 = k.reshape(nb, seq_len, head_dim).astype(cd)
        v3 = v.reshape(nb, seq_len, head_dim).astype(cd)

        s = jnp.einsum("nld,nmd->nlm", q3, k3,
                       preferred_element_type=jnp.float32)    # (nb, L, L)
        s = s - jnp.max(s, axis=-1, keepdims=True)            # stable softmax
        p = jnp.exp(s)
        p = p * _softmax_recip(jnp.sum(p, axis=-1, keepdims=True))

        o = jnp.einsum("nlm,nmd->nld", p.astype(cd), v3,
                       preferred_element_type=jnp.float32)    # (nb, L, hd)

        # Per-head rows of the lane-dense (C, C) out-proj -> full-C-lane MXU
        # partials, merged by fp32 accumulation (no lane-axis concat).
        attn = attn + jnp.dot(o.reshape(NL, head_dim).astype(cd),
                              w_out_full[lo: lo + head_dim, :],
                              preferred_element_type=jnp.float32)

    x = x + attn + b_out_ref[0]                                # residual 1

    # ---------------- ln_2 + MLP (QuickGELU) --------------------------------
    xn2 = _layernorm(x, ln2_g_ref[0], ln2_b_ref[0]).astype(cd)
    h1 = jnp.dot(xn2, w_fc_ref[0].astype(cd),
                 preferred_element_type=jnp.float32) + b_fc_ref[0]
    h1 = h1 * jax.nn.sigmoid(1.702 * h1)                       # QuickGELU (fp32)
    h2 = jnp.dot(h1.astype(cd), w_proj_ref[0].astype(cd),
                 preferred_element_type=jnp.float32) + b_proj_ref[0]

    y_ref[...] = (x + h2).reshape(nb, seq_len, C).astype(y_ref.dtype)   # residual 2


@functools.partial(jax.jit, static_argnames=("num_heads", "compute_dtype",
                                              "weight_dtype", "batch_block"))
def custom_transformer_forward(x_lnc, layer_params, *, num_heads,
                               compute_dtype=jnp.float32,
                               weight_dtype=jnp.bfloat16,
                               batch_block=None):
    """x_lnc: (L, N, C) like the PyTorch module. Returns (L, N, C)."""
    L, N, C = x_lnc.shape
    H = num_heads
    hd = C // H
    scale = hd ** -0.5
    layers = len(layer_params)
    nb = N if batch_block is None else batch_block
    assert N % nb == 0

    # ---- trace-time weight restructuring (stack on leading layer axis) ----
    def stack(fn, dtype=jnp.float32):
        return jnp.stack([fn(p) for p in layer_params], axis=0).astype(dtype)

    # Fold hd**-0.5 into the Q third of the fused in-proj.
    col_scale = jnp.concatenate([jnp.full((C,), scale, jnp.float32),
                                 jnp.ones((2 * C,), jnp.float32)])

    ln1_g = stack(lambda p: p["ln1_g"])                            # (Lyr, 1, C)  fp32
    ln1_b = stack(lambda p: p["ln1_b"])
    w_in = stack(lambda p: p["w_in"] * col_scale, weight_dtype)    # (Lyr, C, 3C) lane-dense
    b_in = stack(lambda p: p["b_in"] * col_scale)                  # (Lyr, 1, 3C) fp32
    w_out = stack(lambda p: p["w_out"], weight_dtype)              # (Lyr, C, C)  lane-dense
    b_out = stack(lambda p: p["b_out"])                            # (Lyr, 1, C)
    ln2_g = stack(lambda p: p["ln2_g"])
    ln2_b = stack(lambda p: p["ln2_b"])
    w_fc = stack(lambda p: p["w_fc"], weight_dtype)                # (Lyr, C, 4C)
    b_fc = stack(lambda p: p["b_fc"])                              # (Lyr, 1, 4C)
    w_proj = stack(lambda p: p["w_proj"], weight_dtype)            # (Lyr, 4C, C)
    b_proj = stack(lambda p: p["b_proj"])                          # (Lyr, 1, C)

    weights = (ln1_g, ln1_b, w_in, b_in, w_out, b_out,
               ln2_g, ln2_b, w_fc, b_fc, w_proj, b_proj)

    x_nlc = jnp.transpose(x_lnc, (1, 0, 2))                        # (N, L, C)

    # Activation: resident across the layer axis, blocked over batch.
    act_spec = pl.BlockSpec((nb, L, C), lambda b, l: (b, 0, 0))
    # All stacked weights are 3D: one layer-slab per grid step.
    weight_specs = [pl.BlockSpec((1,) + a.shape[1:], lambda b, l: (l, 0, 0))
                    for a in weights]

    kernel = functools.partial(_fused_block_kernel, nb, L, H, hd, compute_dtype)

    y_nlc = pl.pallas_call(
        kernel,
        out_shape=jax.ShapeDtypeStruct((N, L, C), x_lnc.dtype),
        grid=(N // nb, layers),
        in_specs=[act_spec] + weight_specs,
        out_specs=act_spec,
        input_output_aliases={0: 0},               # x HBM buffer reused for output
        compiler_params=pltpu.CompilerParams(
            # batch blocks independent (megacore on v7x); layers sequential.
            dimension_semantics=("parallel", "arbitrary"),
            # TODO(synk): re-budget per generation at real widths
            #             (<=56 MiB on v7x, ~96-110 MiB on v6e/v5e).
            vmem_limit_bytes=32 * 1024 * 1024),
    )(x_nlc, *weights)

    return jnp.transpose(y_nlc, (1, 0, 2))


# -------------------------- pure-JAX reference ------------------------------
def _reference_block(x_lnc, p, num_heads):
    L, N, C = x_lnc.shape
    hd = C // num_heads
    scale = hd ** -0.5

    def ln(x, g, b):
        mu = jnp.mean(x, -1, keepdims=True)
        var = jnp.mean((x - mu) ** 2, -1, keepdims=True)
        return (x - mu) / jnp.sqrt(var + LN_EPS) * g[0] + b[0]

    xn = ln(x_lnc, p["ln1_g"], p["ln1_b"])
    qkv = xn @ p["w_in"] + p["b_in"][0]
    q, k, v = jnp.split(qkv, 3, axis=-1)

    def heads(t):  # (L, N, C) -> (N, H, L, hd)
        return jnp.transpose(t.reshape(L, N, num_heads, hd), (1, 2, 0, 3))

    qh, kh, vh = heads(q) * scale, heads(k), heads(v)
    s = jnp.einsum("nhld,nhmd->nhlm", qh, kh)
    a = jax.nn.softmax(s, axis=-1)
    o = jnp.einsum("nhlm,nhmd->nhld", a, vh)
    o = jnp.transpose(o, (2, 0, 1, 3)).reshape(L, N, C)
    x = x_lnc + (o @ p["w_out"] + p["b_out"][0])
    xn2 = ln(x, p["ln2_g"], p["ln2_b"])
    h1 = xn2 @ p["w_fc"] + p["b_fc"][0]
    h1 = h1 * jax.nn.sigmoid(1.702 * h1)
    return x + (h1 @ p["w_proj"] + p["b_proj"][0])


def reference_forward(x_lnc, layer_params, num_heads):
    for p in layer_params:
        x_lnc = _reference_block(x_lnc, p, num_heads)
    return x_lnc


# ------------------------------ param init ----------------------------------
def init_params(key, width, layers):
    params = []
    for i in range(layers):
        ks = jax.random.split(jax.random.fold_in(key, i), 8)
        w = lambda k, shape, s=0.02: jax.random.normal(k, shape, jnp.float32) * s
        params.append(dict(
            ln1_g=jnp.ones((1, width), jnp.float32),
            ln1_b=jnp.zeros((1, width), jnp.float32),
            w_in=w(ks[0], (width, 3 * width)), b_in=w(ks[1], (1, 3 * width)),
            w_out=w(ks[2], (width, width)), b_out=w(ks[3], (1, width)),
            ln2_g=jnp.ones((1, width), jnp.float32),
            ln2_b=jnp.zeros((1, width), jnp.float32),
            w_fc=w(ks[4], (width, 4 * width)), b_fc=w(ks[5], (1, 4 * width)),
            w_proj=w(ks[6], (4 * width, width)), b_proj=w(ks[7], (1, width)),
        ))
    return params


if __name__ == "__main__":
    # CustomTransformer(width=32, layers=2, heads=4), input x: (L=8, N=2, C=32)
    width, layers, heads = 32, 2, 4
    L, N = 8, 2

    key = jax.random.PRNGKey(0)
    kx, kp = jax.random.split(key)
    x = jax.random.normal(kx, (L, N, width), jnp.float32)
    params = init_params(kp, width, layers)

    ref = jax.block_until_ready(reference_forward(x, params, heads))

    # 1) Parity path: fp32 weights + fp32 compute, per-sequence batch blocks
    #    (exercises the parallel batch grid axis).
    out32 = jax.block_until_ready(
        custom_transformer_forward(x, params, num_heads=heads,
                                   compute_dtype=jnp.float32,
                                   weight_dtype=jnp.float32,
                                   batch_block=1))
    assert out32.shape == (L, N, width)
    assert bool(jnp.all(jnp.isfinite(out32)))
    err32 = float(jnp.max(jnp.abs(out32 - ref)))
    assert err32 < 1e-4, err32

    # 2) Production path: bf16 weight streaming + bf16 MXU compute (fp32
    #    LayerNorm / softmax / residual / accumulation), whole-batch block.
    outbf = jax.block_until_ready(
        custom_transformer_forward(x, params, num_heads=heads,
                                   compute_dtype=jnp.bfloat16,
                                   weight_dtype=jnp.bfloat16))
    assert bool(jnp.all(jnp.isfinite(outbf)))
    errbf = float(jnp.max(jnp.abs(outbf - ref)))
    assert errbf < 3e-2, errbf

    print("KERNEL_OK")
</pallas_src>

<mosaic_0001>
module attributes {stable_mosaic.version = 11 : i64} {
  func.func @_fused_block_kernel(%arg0: i32, %arg1: i32, %arg2: memref<1x8x32xf32, #tpu.memory_space<vmem>>, %arg3: memref<1x1x32xf32, #tpu.memory_space<vmem>>, %arg4: memref<1x1x32xf32, #tpu.memory_space<vmem>>, %arg5: memref<1x32x96xf32, #tpu.memory_space<vmem>>, %arg6: memref<1x1x96xf32, #tpu.memory_space<vmem>>, %arg7: memref<1x32x32xf32, #tpu.memory_space<vmem>>, %arg8: memref<1x1x32xf32, #tpu.memory_space<vmem>>, %arg9: memref<1x1x32xf32, #tpu.memory_space<vmem>>, %arg10: memref<1x1x32xf32, #tpu.memory_space<vmem>>, %arg11: memref<1x32x128xf32, #tpu.memory_space<vmem>>, %arg12: memref<1x1x128xf32, #tpu.memory_space<vmem>>, %arg13: memref<1x128x32xf32, #tpu.memory_space<vmem>>, %arg14: memref<1x1x32xf32, #tpu.memory_space<vmem>>, %arg15: memref<1x8x32xf32, #tpu.memory_space<vmem>>) attributes {dimension_semantics = [#tpu.dimension_semantics<parallel>, #tpu.dimension_semantics<arbitrary>], iteration_bounds = array<i64: 2, 2>, scalar_prefetch = 0 : i64, scratch_operands = 0 : i64, tpu.core_type = #tpu.core_type<tc>, window_params = [{transform_indices = @transform_0, window_bounds = array<i64: 1, 8, 32>}, {transform_indices = @transform_1, window_bounds = array<i64: 1, 1, 32>}, {transform_indices = @transform_2, window_bounds = array<i64: 1, 1, 32>}, {transform_indices = @transform_3, window_bounds = array<i64: 1, 32, 96>}, {transform_indices = @transform_4, window_bounds = array<i64: 1, 1, 96>}, {transform_indices = @transform_5, window_bounds = array<i64: 1, 32, 32>}, {transform_indices = @transform_6, window_bounds = array<i64: 1, 1, 32>}, {transform_indices = @transform_7, window_bounds = array<i64: 1, 1, 32>}, {transform_indices = @transform_8, window_bounds = array<i64: 1, 1, 32>}, {transform_indices = @transform_9, window_bounds = array<i64: 1, 32, 128>}, {transform_indices = @transform_10, window_bounds = array<i64: 1, 1, 128>}, {transform_indices = @transform_11, window_bounds = array<i64: 1, 128, 32>}, {transform_indices = @transform_12, window_bounds = array<i64: 1, 1, 32>}, {transform_indices = @transform_13, window_bounds = array<i64: 1, 8, 32>}]} {
    %c0_i32 = arith.constant 0 : i32
    %0 = arith.cmpi eq, %arg1, %c0_i32 : i32
    %1 = arith.extui %0 : i1 to i32
    %c0_i32_0 = arith.constant 0 : i32
    %2 = arith.cmpi ne, %1, %c0_i32_0 : i32
    scf.if %2 {
      %c0_81 = arith.constant 0 : index
      %c0_82 = arith.constant 0 : index
      %c0_83 = arith.constant 0 : index
      %201 = vector.load %arg2[%c0_81, %c0_82, %c0_83] : memref<1x8x32xf32, #tpu.memory_space<vmem>>, vector<1x8x32xf32>
      %c0_84 = arith.constant 0 : index
      %c0_85 = arith.constant 0 : index
      %c0_86 = arith.constant 0 : index
      %202 = vector.load %arg15[%c0_84, %c0_85, %c0_86] : memref<1x8x32xf32, #tpu.memory_space<vmem>>, vector<1x8x32xf32>
      tpu.vector_store %arg15[%c0_84, %c0_85, %c0_86], %201 {strides = array<i32>} : memref<1x8x32xf32, #tpu.memory_space<vmem>>, vector<1x8x32xf32>,
    } else {
    }
    %c0 = arith.constant 0 : index
    %c0_1 = arith.constant 0 : index
    %c0_2 = arith.constant 0 : index
    %3 = vector.load %arg15[%c0, %c0_1, %c0_2] : memref<1x8x32xf32, #tpu.memory_space<vmem>>, vector<1x8x32xf32>
    %4 = vector.shape_cast %3 : vector<1x8x32xf32> to vector<8x32xf32>
    %c0_3 = arith.constant 0 : index
    %c0_4 = arith.constant 0 : index
    %c0_5 = arith.constant 0 : index
    %5 = vector.load %arg3[%c0_3, %c0_4, %c0_5] : memref<1x1x32xf32, #tpu.memory_space<vmem>>, vector<1x1x32xf32>
    %6 = vector.shape_cast %5 : vector<1x1x32xf32> to vector<1x32xf32>
    %c0_6 = arith.constant 0 : index
    %c0_7 = arith.constant 0 : index
    %c0_8 = arith.constant 0 : index
    %7 = vector.load %arg4[%c0_6, %c0_7, %c0_8] : memref<1x1x32xf32, #tpu.memory_space<vmem>>, vector<1x1x32xf32>
    %8 = vector.shape_cast %7 : vector<1x1x32xf32> to vector<1x32xf32>
    %cst = arith.constant dense<0.000000e+00> : vector<8xf32>
    %9 = vector.multi_reduction <add>, %4, %cst [1] : vector<8x32xf32> to vector<8xf32>
    %10 = vector.shape_cast %9 : vector<8xf32> to vector<8x1xf32>
    %cst_9 = arith.constant 3.200000e+01 : f32
    %11 = vector.broadcast %cst_9 : f32 to vector<8x1xf32>
    %12 = arith.divf %10, %11 : vector<8x1xf32>
    %13 = vector.broadcast %12 : vector<8x1xf32> to vector<8x32xf32>
    %14 = arith.subf %4, %13 : vector<8x32xf32>
    %15 = arith.mulf %14, %14 : vector<8x32xf32>
    %cst_10 = arith.constant dense<0.000000e+00> : vector<8xf32>
    %16 = vector.multi_reduction <add>, %15, %cst_10 [1] : vector<8x32xf32> to vector<8xf32>
    %17 = vector.shape_cast %16 : vector<8xf32> to vector<8x1xf32>
    %cst_11 = arith.constant 3.200000e+01 : f32
    %18 = vector.broadcast %cst_11 : f32 to vector<8x1xf32>
    %19 = arith.divf %17, %18 : vector<8x1xf32>
    %20 = vector.broadcast %12 : vector<8x1xf32> to vector<8x32xf32>
    %21 = arith.subf %4, %20 : vector<8x32xf32>
    %cst_12 = arith.constant 9.99999974E-6 : f32
    %22 = vector.broadcast %cst_12 : f32 to vector<8x1xf32>
    %23 = arith.addf %19, %22 : vector<8x1xf32>
    %24 = math.rsqrt %23 : vector<8x1xf32>
    %25 = vector.broadcast %24 : vector<8x1xf32> to vector<8x32xf32>
    %26 = arith.mulf %21, %25 : vector<8x32xf32>
    %27 = vector.broadcast %6 : vector<1x32xf32> to vector<8x32xf32>
    %28 = arith.mulf %26, %27 : vector<8x32xf32>
    %29 = vector.broadcast %8 : vector<1x32xf32> to vector<8x32xf32>
    %30 = arith.addf %28, %29 : vector<8x32xf32>
    %c0_13 = arith.constant 0 : index
    %c0_14 = arith.constant 0 : index
    %c0_15 = arith.constant 0 : index
    %31 = vector.load %arg5[%c0_13, %c0_14, %c0_15] : memref<1x32x96xf32, #tpu.memory_space<vmem>>, vector<1x32x96xf32>
    %32 = vector.shape_cast %31 : vector<1x32x96xf32> to vector<32x96xf32>
    %cst_16 = arith.constant dense<0.000000e+00> : vector<8x96xf32>
    %33 = tpu.matmul %30, %32, %cst_16 {dimension_numbers = #tpu.dot_dimension_numbers<[1], [0], [0], [1], [0, 0, 1, 1], [], []>} : vector<8x32xf32>, vector<32x96xf32>, vector<8x96xf32> -> vector<8x96xf32>
    %c0_17 = arith.constant 0 : index
    %c0_18 = arith.constant 0 : index
    %c0_19 = arith.constant 0 : index
    %34 = vector.load %arg6[%c0_17, %c0_18, %c0_19] : memref<1x1x96xf32, #tpu.memory_space<vmem>>, vector<1x1x96xf32>
    %35 = vector.shape_cast %34 : vector<1x1x96xf32> to vector<1x96xf32>
    %36 = vector.broadcast %35 : vector<1x96xf32> to vector<8x96xf32>
    %37 = arith.addf %33, %36 : vector<8x96xf32>
    %c0_20 = arith.constant 0 : index
    %c0_21 = arith.constant 0 : index
    %c0_22 = arith.constant 0 : index
    %38 = vector.load %arg7[%c0_20, %c0_21, %c0_22] : memref<1x32x32xf32, #tpu.memory_space<vmem>>, vector<1x32x32xf32>
    %39 = vector.shape_cast %38 : vector<1x32x32xf32> to vector<32x32xf32>
    %cst_23 = arith.constant 0.000000e+00 : f32
    %40 = vector.broadcast %cst_23 : f32 to vector<8x32xf32>
    %41 = vector.extract_strided_slice %37 {offsets = [0, 0], sizes = [8, 8], strides = [1, 1]} : vector<8x96xf32> to vector<8x8xf32>
    %42 = vector.extract_strided_slice %37 {offsets = [0, 32], sizes = [8, 8], strides = [1, 1]} : vector<8x96xf32> to vector<8x8xf32>
    %43 = vector.extract_strided_slice %37 {offsets = [0, 64], sizes = [8, 8], strides = [1, 1]} : vector<8x96xf32> to vector<8x8xf32>
    %44 = vector.shape_cast %41 : vector<8x8xf32> to vector<1x8x8xf32>
    %45 = vector.shape_cast %42 : vector<8x8xf32> to vector<1x8x8xf32>
    %46 = vector.shape_cast %43 : vector<8x8xf32> to vector<1x8x8xf32>
    "tpu.trace_start"() <{level = 10 : i32, message = "nld,nmd->nlm"}> : () -> ()
    %cst_24 = arith.constant dense<0.000000e+00> : vector<1x8x8xf32>
    %47 = tpu.matmul %44, %45, %cst_24 {dimension_numbers = #tpu.dot_dimension_numbers<[2], [2], [1], [1], [0, 0, 0, 1, 1, 1], [0], [0]>} : vector<1x8x8xf32>, vector<1x8x8xf32>, vector<1x8x8xf32> -> vector<1x8x8xf32>
    "tpu.trace_stop"() : () -> ()
    %cst_25 = arith.constant dense<0xFF800000> : vector<1x8xf32>
    %48 = vector.multi_reduction <maximumf>, %47, %cst_25 [2] : vector<1x8x8xf32> to vector<1x8xf32>
    %49 = vector.shape_cast %48 : vector<1x8xf32> to vector<1x8x1xf32>
    %50 = vector.broadcast %49 : vector<1x8x1xf32> to vector<1x8x8xf32>
    %51 = arith.subf %47, %50 : vector<1x8x8xf32>
    %52 = math.exp %51 : vector<1x8x8xf32>
    %cst_26 = arith.constant dense<0.000000e+00> : vector<1x8xf32>
    %53 = vector.multi_reduction <add>, %52, %cst_26 [2] : vector<1x8x8xf32> to vector<1x8xf32>
    %54 = vector.shape_cast %53 : vector<1x8xf32> to vector<1x8x1xf32>
    %55 = tpu.reciprocal %54 {approx = true} : vector<1x8x1xf32> -> vector<1x8x1xf32>
    %56 = arith.mulf %54, %55 : vector<1x8x1xf32>
    %cst_27 = arith.constant 2.000000e+00 : f32
    %57 = vector.broadcast %cst_27 : f32 to vector<1x8x1xf32>
    %58 = arith.subf %57, %56 : vector<1x8x1xf32>
    %59 = arith.mulf %55, %58 : vector<1x8x1xf32>
    %60 = vector.broadcast %59 : vector<1x8x1xf32> to vector<1x8x8xf32>
    %61 = arith.mulf %52, %60 : vector<1x8x8xf32>
    "tpu.trace_start"() <{level = 10 : i32, message = "nlm,nmd->nld"}> : () -> ()
    %cst_28 = arith.constant dense<0.000000e+00> : vector<1x8x8xf32>
    %62 = tpu.matmul %61, %46, %cst_28 {dimension_numbers = #tpu.dot_dimension_numbers<[2], [1], [1], [2], [0, 0, 0, 1, 1, 2], [0], [0]>} : vector<1x8x8xf32>, vector<1x8x8xf32>, vector<1x8x8xf32> -> vector<1x8x8xf32>
    "tpu.trace_stop"() : () -> ()
    %63 = vector.shape_cast %62 : vector<1x8x8xf32> to vector<8x8xf32>
    %64 = vector.extract_strided_slice %39 {offsets = [0, 0], sizes = [8, 32], strides = [1, 1]} : vector<32x32xf32> to vector<8x32xf32>
    %cst_29 = arith.constant dense<0.000000e+00> : vector<8x32xf32>
    %65 = tpu.matmul %63, %64, %cst_29 {dimension_numbers = #tpu.dot_dimension_numbers<[1], [0], [0], [1], [0, 0, 1, 1], [], []>} : vector<8x8xf32>, vector<8x32xf32>, vector<8x32xf32> -> vector<8x32xf32>
    %66 = arith.addf %40, %65 : vector<8x32xf32>
    %67 = vector.extract_strided_slice %37 {offsets = [0, 8], sizes = [8, 8], strides = [1, 1]} : vector<8x96xf32> to vector<8x8xf32>
    %68 = vector.extract_strided_slice %37 {offsets = [0, 40], sizes = [8, 8], strides = [1, 1]} : vector<8x96xf32> to vector<8x8xf32>
    %69 = vector.extract_strided_slice %37 {offsets = [0, 72], sizes = [8, 8], strides = [1, 1]} : vector<8x96xf32> to vector<8x8xf32>
    %70 = vector.shape_cast %67 : vector<8x8xf32> to vector<1x8x8xf32>
    %71 = vector.shape_cast %68 : vector<8x8xf32> to vector<1x8x8xf32>
    %72 = vector.shape_cast %69 : vector<8x8xf32> to vector<1x8x8xf32>
    "tpu.trace_start"() <{level = 10 : i32, message = "nld,nmd->nlm"}> : () -> ()
    %cst_30 = arith.constant dense<0.000000e+00> : vector<1x8x8xf32>
    %73 = tpu.matmul %70, %71, %cst_30 {dimension_numbers = #tpu.dot_dimension_numbers<[2], [2], [1], [1], [0, 0, 0, 1, 1, 1], [0], [0]>} : vector<1x8x8xf32>, vector<1x8x8xf32>, vector<1x8x8xf32> -> vector<1x8x8xf32>
    "tpu.trace_stop"() : () -> ()
    %cst_31 = arith.constant dense<0xFF800000> : vector<1x8xf32>
    %74 = vector.multi_reduction <maximumf>, %73, %cst_31 [2] : vector<1x8x8xf32> to vector<1x8xf32>
    %75 = vector.shape_cast %74 : vector<1x8xf32> to vector<1x8x1xf32>
    %76 = vector.broadcast %75 : vector<1x8x1xf32> to vector<1x8x8xf32>
    %77 = arith.subf %73, %76 : vector<1x8x8xf32>
    %78 = math.exp %77 : vector<1x8x8xf32>
    %cst_32 = arith.constant dense<0.000000e+00> : vector<1x8xf32>
    %79 = vector.multi_reduction <add>, %78, %cst_32 [2] : vector<1x8x8xf32> to vector<1x8xf32>
    %80 = vector.shape_cast %79 : vector<1x8xf32> to vector<1x8x1xf32>
    %81 = tpu.reciprocal %80 {approx = true} : vector<1x8x1xf32> -> vector<1x8x1xf32>
    %82 = arith.mulf %80, %81 : vector<1x8x1xf32>
    %cst_33 = arith.constant 2.000000e+00 : f32
    %83 = vector.broadcast %cst_33 : f32 to vector<1x8x1xf32>
    %84 = arith.subf %83, %82 : vector<1x8x1xf32>
    %85 = arith.mulf %81, %84 : vector<1x8x1xf32>
    %86 = vector.broadcast %85 : vector<1x8x1xf32> to vector<1x8x8xf32>
    %87 = arith.mulf %78, %86 : vector<1x8x8xf32>
    "tpu.trace_start"() <{level = 10 : i32, message = "nlm,nmd->nld"}> : () -> ()
    %cst_34 = arith.constant dense<0.000000e+00> : vector<1x8x8xf32>
    %88 = tpu.matmul %87, %72, %cst_34 {dimension_numbers = #tpu.dot_dimension_numbers<[2], [1], [1], [2], [0, 0, 0, 1, 1, 2], [0], [0]>} : vector<1x8x8xf32>, vector<1x8x8xf32>, vector<1x8x8xf32> -> vector<1x8x8xf32>
    "tpu.trace_stop"() : () -> ()
    %89 = vector.shape_cast %88 : vector<1x8x8xf32> to vector<8x8xf32>
    %90 = vector.extract_strided_slice %39 {offsets = [8, 0], sizes = [8, 32], strides = [1, 1]} : vector<32x32xf32> to vector<8x32xf32>
    %cst_35 = arith.constant dense<0.000000e+00> : vector<8x32xf32>
    %91 = tpu.matmul %89, %90, %cst_35 {dimension_numbers = #tpu.dot_dimension_numbers<[1], [0], [0], [1], [0, 0, 1, 1], [], []>} : vector<8x8xf32>, vector<8x32xf32>, vector<8x32xf32> -> vector<8x32xf32>
    %92 = arith.addf %66, %91 : vector<8x32xf32>
    %93 = vector.extract_strided_slice %37 {offsets = [0, 16], sizes = [8, 8], strides = [1, 1]} : vector<8x96xf32> to vector<8x8xf32>
    %94 = vector.extract_strided_slice %37 {offsets = [0, 48], sizes = [8, 8], strides = [1, 1]} : vector<8x96xf32> to vector<8x8xf32>
    %95 = vector.extract_strided_slice %37 {offsets = [0, 80], sizes = [8, 8], strides = [1, 1]} : vector<8x96xf32> to vector<8x8xf32>
    %96 = vector.shape_cast %93 : vector<8x8xf32> to vector<1x8x8xf32>
    %97 = vector.shape_cast %94 : vector<8x8xf32> to vector<1x8x8xf32>
    %98 = vector.shape_cast %95 : vector<8x8xf32> to vector<1x8x8xf32>
    "tpu.trace_start"() <{level = 10 : i32, message = "nld,nmd->nlm"}> : () -> ()
    %cst_36 = arith.constant dense<0.000000e+00> : vector<1x8x8xf32>
    %99 = tpu.matmul %96, %97, %cst_36 {dimension_numbers = #tpu.dot_dimension_numbers<[2], [2], [1], [1], [0, 0, 0, 1, 1, 1], [0], [0]>} : vector<1x8x8xf32>, vector<1x8x8xf32>, vector<1x8x8xf32> -> vector<1x8x8xf32>
    "tpu.trace_stop"() : () -> ()
    %cst_37 = arith.constant dense<0xFF800000> : vector<1x8xf32>
    %100 = vector.multi_reduction <maximumf>, %99, %cst_37 [2] : vector<1x8x8xf32> to vector<1x8xf32>
    %101 = vector.shape_cast %100 : vector<1x8xf32> to vector<1x8x1xf32>
    %102 = vector.broadcast %101 : vector<1x8x1xf32> to vector<1x8x8xf32>
    %103 = arith.subf %99, %102 : vector<1x8x8xf32>
    %104 = math.exp %103 : vector<1x8x8xf32>
    %cst_38 = arith.constant dense<0.000000e+00> : vector<1x8xf32>
    %105 = vector.multi_reduction <add>, %104, %cst_38 [2] : vector<1x8x8xf32> to vector<1x8xf32>
    %106 = vector.shape_cast %105 : vector<1x8xf32> to vector<1x8x1xf32>
    %107 = tpu.reciprocal %106 {approx = true} : vector<1x8x1xf32> -> vector<1x8x1xf32>
    %108 = arith.mulf %106, %107 : vector<1x8x1xf32>
    %cst_39 = arith.constant 2.000000e+00 : f32
    %109 = vector.broadcast %cst_39 : f32 to vector<1x8x1xf32>
    %110 = arith.subf %109, %108 : vector<1x8x1xf32>
    %111 = arith.mulf %107, %110 : vector<1x8x1xf32>
    %112 = vector.broadcast %111 : vector<1x8x1xf32> to vector<1x8x8xf32>
    %113 = arith.mulf %104, %112 : vector<1x8x8xf32>
    "tpu.trace_start"() <{level = 10 : i32, message = "nlm,nmd->nld"}> : () -> ()
    %cst_40 = arith.constant dense<0.000000e+00> : vector<1x8x8xf32>
    %114 = tpu.matmul %113, %98, %cst_40 {dimension_numbers = #tpu.dot_dimension_numbers<[2], [1], [1], [2], [0, 0, 0, 1, 1, 2], [0], [0]>} : vector<1x8x8xf32>, vector<1x8x8xf32>, vector<1x8x8xf32> -> vector<1x8x8xf32>
    "tpu.trace_stop"() : () -> ()
    %115 = vector.shape_cast %114 : vector<1x8x8xf32> to vector<8x8xf32>
    %116 = vector.extract_strided_slice %39 {offsets = [16, 0], sizes = [8, 32], strides = [1, 1]} : vector<32x32xf32> to vector<8x32xf32>
    %cst_41 = arith.constant dense<0.000000e+00> : vector<8x32xf32>
    %117 = tpu.matmul %115, %116, %cst_41 {dimension_numbers = #tpu.dot_dimension_numbers<[1], [0], [0], [1], [0, 0, 1, 1], [], []>} : vector<8x8xf32>, vector<8x32xf32>, vector<8x32xf32> -> vector<8x32xf32>
    %118 = arith.addf %92, %117 : vector<8x32xf32>
    %119 = vector.extract_strided_slice %37 {offsets = [0, 24], sizes = [8, 8], strides = [1, 1]} : vector<8x96xf32> to vector<8x8xf32>
    %120 = vector.extract_strided_slice %37 {offsets = [0, 56], sizes = [8, 8], strides = [1, 1]} : vector<8x96xf32> to vector<8x8xf32>
    %121 = vector.extract_strided_slice %37 {offsets = [0, 88], sizes = [8, 8], strides = [1, 1]} : vector<8x96xf32> to vector<8x8xf32>
    %122 = vector.shape_cast %119 : vector<8x8xf32> to vector<1x8x8xf32>
    %123 = vector.shape_cast %120 : vector<8x8xf32> to vector<1x8x8xf32>
    %124 = vector.shape_cast %121 : vector<8x8xf32> to vector<1x8x8xf32>
    "tpu.trace_start"() <{level = 10 : i32, message = "nld,nmd->nlm"}> : () -> ()
    %cst_42 = arith.constant dense<0.000000e+00> : vector<1x8x8xf32>
    %125 = tpu.matmul %122, %123, %cst_42 {dimension_numbers = #tpu.dot_dimension_numbers<[2], [2], [1], [1], [0, 0, 0, 1, 1, 1], [0], [0]>} : vector<1x8x8xf32>, vector<1x8x8xf32>, vector<1x8x8xf32> -> vector<1x8x8xf32>
    "tpu.trace_stop"() : () -> ()
    %cst_43 = arith.constant dense<0xFF800000> : vector<1x8xf32>
    %126 = vector.multi_reduction <maximumf>, %125, %cst_43 [2] : vector<1x8x8xf32> to vector<1x8xf32>
    %127 = vector.shape_cast %126 : vector<1x8xf32> to vector<1x8x1xf32>
    %128 = vector.broadcast %127 : vector<1x8x1xf32> to vector<1x8x8xf32>
    %129 = arith.subf %125, %128 : vector<1x8x8xf32>
    %130 = math.exp %129 : vector<1x8x8xf32>
    %cst_44 = arith.constant dense<0.000000e+00> : vector<1x8xf32>
    %131 = vector.multi_reduction <add>, %130, %cst_44 [2] : vector<1x8x8xf32> to vector<1x8xf32>
    %132 = vector.shape_cast %131 : vector<1x8xf32> to vector<1x8x1xf32>
    %133 = tpu.reciprocal %132 {approx = true} : vector<1x8x1xf32> -> vector<1x8x1xf32>
    %134 = arith.mulf %132, %133 : vector<1x8x1xf32>
    %cst_45 = arith.constant 2.000000e+00 : f32
    %135 = vector.broadcast %cst_45 : f32 to vector<1x8x1xf32>
    %136 = arith.subf %135, %134 : vector<1x8x1xf32>
    %137 = arith.mulf %133, %136 : vector<1x8x1xf32>
    %138 = vector.broadcast %137 : vector<1x8x1xf32> to vector<1x8x8xf32>
    %139 = arith.mulf %130, %138 : vector<1x8x8xf32>
    "tpu.trace_start"() <{level = 10 : i32, message = "nlm,nmd->nld"}> : () -> ()
    %cst_46 = arith.constant dense<0.000000e+00> : vector<1x8x8xf32>
    %140 = tpu.matmul %139, %124, %cst_46 {dimension_numbers = #tpu.dot_dimension_numbers<[2], [1], [1], [2], [0, 0, 0, 1, 1, 2], [0], [0]>} : vector<1x8x8xf32>, vector<1x8x8xf32>, vector<1x8x8xf32> -> vector<1x8x8xf32>
    "tpu.trace_stop"() : () -> ()
    %141 = vector.shape_cast %140 : vector<1x8x8xf32> to vector<8x8xf32>
    %142 = vector.extract_strided_slice %39 {offsets = [24, 0], sizes = [8, 32], strides = [1, 1]} : vector<32x32xf32> to vector<8x32xf32>
    %cst_47 = arith.constant dense<0.000000e+00> : vector<8x32xf32>
    %143 = tpu.matmul %141, %142, %cst_47 {dimension_numbers = #tpu.dot_dimension_numbers<[1], [0], [0], [1], [0, 0, 1, 1], [], []>} : vector<8x8xf32>, vector<8x32xf32>, vector<8x32xf32> -> vector<8x32xf32>
    %144 = arith.addf %118, %143 : vector<8x32xf32>
    %145 = arith.addf %4, %144 : vector<8x32xf32>
    %c0_48 = arith.constant 0 : index
    %c0_49 = arith.constant 0 : index
    %c0_50 = arith.constant 0 : index
    %146 = vector.load %arg8[%c0_48, %c0_49, %c0_50] : memref<1x1x32xf32, #tpu.memory_space<vmem>>, vector<1x1x32xf32>
    %147 = vector.shape_cast %146 : vector<1x1x32xf32> to vector<1x32xf32>
    %148 = vector.broadcast %147 : vector<1x32xf32> to vector<8x32xf32>
    %149 = arith.addf %145, %148 : vector<8x32xf32>
    %c0_51 = arith.constant 0 : index
    %c0_52 = arith.constant 0 : index
    %c0_53 = arith.constant 0 : index
    %150 = vector.load %arg9[%c0_51, %c0_52, %c0_53] : memref<1x1x32xf32, #tpu.memory_space<vmem>>, vector<1x1x32xf32>
    %151 = vector.shape_cast %150 : vector<1x1x32xf32> to vector<1x32xf32>
    %c0_54 = arith.constant 0 : index
    %c0_55 = arith.constant 0 : index
    %c0_56 = arith.constant 0 : index
    %152 = vector.load %arg10[%c0_54, %c0_55, %c0_56] : memref<1x1x32xf32, #tpu.memory_space<vmem>>, vector<1x1x32xf32>
    %153 = vector.shape_cast %152 : vector<1x1x32xf32> to vector<1x32xf32>
    %cst_57 = arith.constant dense<0.000000e+00> : vector<8xf32>
    %154 = vector.multi_reduction <add>, %149, %cst_57 [1] : vector<8x32xf32> to vector<8xf32>
    %155 = vector.shape_cast %154 : vector<8xf32> to vector<8x1xf32>
    %cst_58 = arith.constant 3.200000e+01 : f32
    %156 = vector.broadcast %cst_58 : f32 to vector<8x1xf32>
    %157 = arith.divf %155, %156 : vector<8x1xf32>
    %158 = vector.broadcast %157 : vector<8x1xf32> to vector<8x32xf32>
    %159 = arith.subf %149, %158 : vector<8x32xf32>
    %160 = arith.mulf %159, %159 : vector<8x32xf32>
    %cst_59 = arith.constant dense<0.000000e+00> : vector<8xf32>
    %161 = vector.multi_reduction <add>, %160, %cst_59 [1] : vector<8x32xf32> to vector<8xf32>
    %162 = vector.shape_cast %161 : vector<8xf32> to vector<8x1xf32>
    %cst_60 = arith.constant 3.200000e+01 : f32
    %163 = vector.broadcast %cst_60 : f32 to vector<8x1xf32>
    %164 = arith.divf %162, %163 : vector<8x1xf32>
    %165 = vector.broadcast %157 : vector<8x1xf32> to vector<8x32xf32>
    %166 = arith.subf %149, %165 : vector<8x32xf32>
    %cst_61 = arith.constant 9.99999974E-6 : f32
    %167 = vector.broadcast %cst_61 : f32 to vector<8x1xf32>
    %168 = arith.addf %164, %167 : vector<8x1xf32>
    %169 = math.rsqrt %168 : vector<8x1xf32>
    %170 = vector.broadcast %169 : vector<8x1xf32> to vector<8x32xf32>
    %171 = arith.mulf %166, %170 : vector<8x32xf32>
    %172 = vector.broadcast %151 : vector<1x32xf32> to vector<8x32xf32>
    %173 = arith.mulf %171, %172 : vector<8x32xf32>
    %174 = vector.broadcast %153 : vector<1x32xf32> to vector<8x32xf32>
    %175 = arith.addf %173, %174 : vector<8x32xf32>
    %c0_62 = arith.constant 0 : index
    %c0_63 = arith.constant 0 : index
    %c0_64 = arith.constant 0 : index
    %176 = vector.load %arg11[%c0_62, %c0_63, %c0_64] : memref<1x32x128xf32, #tpu.memory_space<vmem>>, vector<1x32x128xf32>
    %177 = vector.shape_cast %176 : vector<1x32x128xf32> to vector<32x128xf32>
    %cst_65 = arith.constant dense<0.000000e+00> : vector<8x128xf32>
    %178 = tpu.matmul %175, %177, %cst_65 {dimension_numbers = #tpu.dot_dimension_numbers<[1], [0], [0], [1], [0, 0, 1, 1], [], []>} : vector<8x32xf32>, vector<32x128xf32>, vector<8x128xf32> -> vector<8x128xf32>
    %c0_66 = arith.constant 0 : index
    %c0_67 = arith.constant 0 : index
    %c0_68 = arith.constant 0 : index
    %179 = vector.load %arg12[%c0_66, %c0_67, %c0_68] : memref<1x1x128xf32, #tpu.memory_space<vmem>>, vector<1x1x128xf32>
    %180 = vector.shape_cast %179 : vector<1x1x128xf32> to vector<1x128xf32>
    %181 = vector.broadcast %180 : vector<1x128xf32> to vector<8x128xf32>
    %182 = arith.addf %178, %181 : vector<8x128xf32>
    %cst_69 = arith.constant 1.702000e+00 : f32
    %183 = vector.broadcast %cst_69 : f32 to vector<8x128xf32>
    %184 = arith.mulf %183, %182 : vector<8x128xf32>
    %185 = arith.negf %184 : vector<8x128xf32>
    %186 = math.exp %185 : vector<8x128xf32>
    %cst_70 = arith.constant 1.000000e+00 : f32
    %187 = vector.broadcast %cst_70 : f32 to vector<8x128xf32>
    %188 = arith.addf %187, %186 : vector<8x128xf32>
    %189 = arith.divf %187, %188 : vector<8x128xf32>
    %190 = arith.mulf %182, %189 : vector<8x128xf32>
    %c0_71 = arith.constant 0 : index
    %c0_72 = arith.constant 0 : index
    %c0_73 = arith.constant 0 : index
    %191 = vector.load %arg13[%c0_71, %c0_72, %c0_73] : memref<1x128x32xf32, #tpu.memory_space<vmem>>, vector<1x128x32xf32>
    %192 = vector.shape_cast %191 : vector<1x128x32xf32> to vector<128x32xf32>
    %cst_74 = arith.constant dense<0.000000e+00> : vector<8x32xf32>
    %193 = tpu.matmul %190, %192, %cst_74 {dimension_numbers = #tpu.dot_dimension_numbers<[1], [0], [0], [1], [0, 0, 1, 1], [], []>} : vector<8x128xf32>, vector<128x32xf32>, vector<8x32xf32> -> vector<8x32xf32>
    %c0_75 = arith.constant 0 : index
    %c0_76 = arith.constant 0 : index
    %c0_77 = arith.constant 0 : index
    %194 = vector.load %arg14[%c0_75, %c0_76, %c0_77] : memref<1x1x32xf32, #tpu.memory_space<vmem>>, vector<1x1x32xf32>
    %195 = vector.shape_cast %194 : vector<1x1x32xf32> to vector<1x32xf32>
    %196 = vector.broadcast %195 : vector<1x32xf32> to vector<8x32xf32>
    %197 = arith.addf %193, %196 : vector<8x32xf32>
    %198 = arith.addf %149, %197 : vector<8x32xf32>
    %199 = vector.shape_cast %198 : vector<8x32xf32> to vector<1x8x32xf32>
    %c0_78 = arith.constant 0 : index
    %c0_79 = arith.constant 0 : index
    %c0_80 = arith.constant 0 : index
    %200 = vector.load %arg15[%c0_78, %c0_79, %c0_80] : memref<1x8x32xf32, #tpu.memory_space<vmem>>, vector<1x8x32xf32>
    tpu.vector_store %arg15[%c0_78, %c0_79, %c0_80], %199 {strides = array<i32>} : memref<1x8x32xf32, #tpu.memory_space<vmem>>, vector<1x8x32xf32>,
    return
  }
  func.func @transform_0(%arg0: i32, %arg1: i32) -> (i32, i32, i32) {
    %c0_i32 = arith.constant 0 : i32
    %c0_i32_0 = arith.constant 0 : i32
    %c0_i32_1 = arith.constant 0 : i32
    return %arg0, %c0_i32, %c0_i32_0 : i32, i32, i32
  }
  func.func @transform_1(%arg0: i32, %arg1: i32) -> (i32, i32, i32) {
    %c0_i32 = arith.constant 0 : i32
    %c0_i32_0 = arith.constant 0 : i32
    %c0_i32_1 = arith.constant 0 : i32
    return %arg1, %c0_i32, %c0_i32_0 : i32, i32, i32
  }
  func.func @transform_2(%arg0: i32, %arg1: i32) -> (i32, i32, i32) {
    %c0_i32 = arith.constant 0 : i32
    %c0_i32_0 = arith.constant 0 : i32
    %c0_i32_1 = arith.constant 0 : i32
    return %arg1, %c0_i32, %c0_i32_0 : i32, i32, i32
  }
  func.func @transform_3(%arg0: i32, %arg1: i32) -> (i32, i32, i32) {
    %c0_i32 = arith.constant 0 : i32
    %c0_i32_0 = arith.constant 0 : i32
    %c0_i32_1 = arith.constant 0 : i32
    return %arg1, %c0_i32, %c0_i32_0 : i32, i32, i32
  }
  func.func @transform_4(%arg0: i32, %arg1: i32) -> (i32, i32, i32) {
    %c0_i32 = arith.constant 0 : i32
    %c0_i32_0 = arith.constant 0 : i32
    %c0_i32_1 = arith.constant 0 : i32
    return %arg1, %c0_i32, %c0_i32_0 : i32, i32, i32
  }
  func.func @transform_5(%arg0: i32, %arg1: i32) -> (i32, i32, i32) {
    %c0_i32 = arith.constant 0 : i32
    %c0_i32_0 = arith.constant 0 : i32
    %c0_i32_1 = arith.constant 0 : i32
    return %arg1, %c0_i32, %c0_i32_0 : i32, i32, i32
  }
  func.func @transform_6(%arg0: i32, %arg1: i32) -> (i32, i32, i32) {
    %c0_i32 = arith.constant 0 : i32
    %c0_i32_0 = arith.constant 0 : i32
    %c0_i32_1 = arith.constant 0 : i32
    return %arg1, %c0_i32, %c0_i32_0 : i32, i32, i32
  }
  func.func @transform_7(%arg0: i32, %arg1: i32) -> (i32, i32, i32) {
    %c0_i32 = arith.constant 0 : i32
    %c0_i32_0 = arith.constant 0 : i32
    %c0_i32_1 = arith.constant 0 : i32
    return %arg1, %c0_i32, %c0_i32_0 : i32, i32, i32
  }
  func.func @transform_8(%arg0: i32, %arg1: i32) -> (i32, i32, i32) {
    %c0_i32 = arith.constant 0 : i32
    %c0_i32_0 = arith.constant 0 : i32
    %c0_i32_1 = arith.constant 0 : i32
    return %arg1, %c0_i32, %c0_i32_0 : i32, i32, i32
  }
  func.func @transform_9(%arg0: i32, %arg1: i32) -> (i32, i32, i32) {
    %c0_i32 = arith.constant 0 : i32
    %c0_i32_0 = arith.constant 0 : i32
    %c0_i32_1 = arith.constant 0 : i32
    return %arg1, %c0_i32, %c0_i32_0 : i32, i32, i32
  }
  func.func @transform_10(%arg0: i32, %arg1: i32) -> (i32, i32, i32) {
    %c0_i32 = arith.constant 0 : i32
    %c0_i32_0 = arith.constant 0 : i32
    %c0_i32_1 = arith.constant 0 : i32
    return %arg1, %c0_i32, %c0_i32_0 : i32, i32, i32
  }
  func.func @transform_11(%arg0: i32, %arg1: i32) -> (i32, i32, i32) {
    %c0_i32 = arith.constant 0 : i32
    %c0_i32_0 = arith.constant 0 : i32
    %c0_i32_1 = arith.constant 0 : i32
    return %arg1, %c0_i32, %c0_i32_0 : i32, i32, i32
  }
  func.func @transform_12(%arg0: i32, %arg1: i32) -> (i32, i32, i32) {
    %c0_i32 = arith.constant 0 : i32
    %c0_i32_0 = arith.constant 0 : i32
    %c0_i32_1 = arith.constant 0 : i32
    return %arg1, %c0_i32, %c0_i32_0 : i32, i32, i32
  }
  func.func @transform_13(%arg0: i32, %arg1: i32) -> (i32, i32, i32) {
    %c0_i32 = arith.constant 0 : i32
    %c0_i32_0 = arith.constant 0 : i32
    %c0_i32_1 = arith.constant 0 : i32
    return %arg0, %c0_i32, %c0_i32_0 : i32, i32, i32
  }
}

</mosaic_0001>

<llo_original>
// kernel: custom_transformer_forward.1
$region0: #{custom_transformer_forward.1}
  #allocation0 [shape = 'u32[]', space=smem, size = 0x4, offset = 0x4, fixed_abs, tag = 'smem constant byte address 0x4 - core index']
  #allocation1 [shape = 'u32[144,128]{1,0:T(1,128)}', space=vmem, size = 0x12000, scoped, tag = 'internal scratch']
  %s0 = inlined_call_operand.vmem [shape: f32[2,8,32], index: 0, kind: input, shape index: {}, may-alias: {0,13}]
  %s1 = inlined_call_operand.vmem [shape: f32[2,1,32], index: 1, kind: input, shape index: {}]
  %s2 = inlined_call_operand.vmem [shape: f32[2,1,32], index: 2, kind: input, shape index: {}]
  %s3 = inlined_call_operand.vmem [shape: f32[2,32,96], index: 3, kind: input, shape index: {}]
  %s4 = inlined_call_operand.vmem [shape: f32[2,1,96], index: 4, kind: input, shape index: {}]
  %s5 = inlined_call_operand.vmem [shape: f32[2,32,32], index: 5, kind: input, shape index: {}]
  %s6 = inlined_call_operand.vmem [shape: f32[2,1,32], index: 6, kind: input, shape index: {}]
  %s7 = inlined_call_operand.vmem [shape: f32[2,1,32], index: 7, kind: input, shape index: {}]
  %s8 = inlined_call_operand.vmem [shape: f32[2,1,32], index: 8, kind: input, shape index: {}]
  %s9 = inlined_call_operand.vmem [shape: f32[2,32,128], index: 9, kind: input, shape index: {}]
  %s10 = inlined_call_operand.vmem [shape: f32[2,1,128], index: 10, kind: input, shape index: {}]
  %s11 = inlined_call_operand.vmem [shape: f32[2,128,32], index: 11, kind: input, shape index: {}]
  %s12 = inlined_call_operand.vmem [shape: f32[2,1,32], index: 12, kind: input, shape index: {}]
  %s13 = inlined_call_operand.vmem [shape: f32[2,8,32], index: 13, kind: output, shape index: {}, may-alias: {0,13}]
  %s14 = sld [smem:[#allocation0]]
  $region89: #{custom_transformer_forward.1} parent=0
    _
  %s16 = ssub.s32 1, %s14
  %s17 = scalar_select 0, %s16, %s14
  loop: start=0, step=1, limit=6
  $region2: #{custom_transformer_forward.1} parent=0 // loop_pre_header
    _
  $region3: #{custom_transformer_forward.1} parent=0 // loop_header
    %s19 = sphi 0, %s23
    %p20 = scmp.ge.s32.totalorder %s19, 6
    %s26 = sphi 0, %s38
    %s27 = sphi 0, %s34
    %s28 = sphi 0, %s26
    %s29 = sphi 0, %s27
    %s30 = sphi 0, %s28
    %s31 = sphi 0, %s29
    %s41 = sphi 0, %s43
    %s44 = sphi 0, %s41
    %s45 = sphi 0, %s44
    %s61 = sphi 0, %s45
    %s67 = sphi 0, %s69
    %s70 = sphi 0, %s67
    %s71 = sphi 0, %s70
    %s87 = sphi 0, %s71
    %s93 = sphi 0, %s95
    %s96 = sphi 0, %s93
    %s97 = sphi 0, %s96
    %s113 = sphi 0, %s97
    %s119 = sphi 0, %s121
    %s122 = sphi 0, %s119
    %s123 = sphi 0, %s122
    %s139 = sphi 0, %s123
    %s145 = sphi 0, %s147
    %s148 = sphi 0, %s145
    %s149 = sphi 0, %s148
    %s165 = sphi 0, %s149
    %s171 = sphi 0, %s173
    %s174 = sphi 0, %s171
    %s175 = sphi 0, %s174
    %s191 = sphi 0, %s175
    %s197 = sphi 0, %s199
    %s200 = sphi 0, %s197
    %s201 = sphi 0, %s200
    %s217 = sphi 0, %s201
    %s223 = sphi 0, %s225
    %s226 = sphi 0, %s223
    %s227 = sphi 0, %s226
    %s243 = sphi 0, %s227
    %s249 = sphi 0, %s251
    %s252 = sphi 0, %s249
    %s253 = sphi 0, %s252
    %s269 = sphi 0, %s253
    %s275 = sphi 0, %s277
    %s278 = sphi 0, %s275
    %s279 = sphi 0, %s278
    %s295 = sphi 0, %s279
    %s301 = sphi 0, %s303
    %s304 = sphi 0, %s301
    %s305 = sphi 0, %s304
    %s321 = sphi 0, %s305
    %s327 = sphi 0, %s329
    %s330 = sphi 0, %s327
    %s331 = sphi 0, %s330
    %s347 = sphi 0, %s331
    %s353 = sphi 0, %s355
    %s356 = sphi 0, %s353
    %s357 = sphi 0, %s356
    %s373 = sphi 0, %s357
    %s379 = sphi 0, %s381
    %s382 = sphi 0, %s379
    %s383 = sphi 0, %s382
    %s399 = sphi 0, %s383
  $region4: #{custom_transformer_forward.1} parent=0 // loop_header_branch
    %22 = sbr.rel (%p20) target = $region8
  $region5: #{custom_transformer_forward.1} parent=0 // loop_body
    %s24 = ssub.s32 %s19, 1
    %s25 = ssub.s32 %s19, 2
    %s32 = sadd.s32 1, %s27
    %p33 = scmp.ge.s32.totalorder %s32, 2
    %s34 = scalar_select %p33, 0, %s32
    %s35 = sadd.s32 1, %s26
    %s36 = scalar_select %p33, %s35, %s26
    %p37 = scmp.ge.s32.totalorder %s36, 2
    %s38 = scalar_select %p37, 0, %s36
    %s39 = ssub.s32 %s26, %s38
    %p40 = scmp.eq.s32.totalorder %s39, 0
    %s42 = sadd.s32 %s41, 1
    %s43 = scalar_select %p40, %s41, %s42
    %p46 = pneg %p40
    %p47 = scmp.eq.s32.totalorder %s19, 3
    %p48 = por %p46, %p47
    %p49 = scmp.ne.s32.totalorder %s41, %s44
    %p50 = scmp.eq.s32.totalorder %s19, 0
    %p51 = por %p49, %p50
    %p52 = scmp.ne.s32.totalorder %s41, %s44
    %p53 = scmp.eq.s32.totalorder %s24, 3
    %p54 = por %p52, %p53
    %p55 = scmp.ne.s32.totalorder %s44, %s45
    %p56 = scmp.eq.s32.totalorder %s24, 0
    %p57 = por %p55, %p56
    %p58 = scmp.ne.s32.totalorder %s44, %s45
    %p59 = scmp.eq.s32.totalorder %s25, 3
    %p60 = por %p58, %p59
    %p62 = scmp.ne.s32.totalorder %s45, %s61
    %p63 = scmp.eq.s32.totalorder %s25, 0
    %p64 = por %p62, %p63
    %s65 = ssub.s32 %s27, %s34
    %p66 = scmp.eq.s32.totalorder %s65, 0
    %s68 = sadd.s32 %s67, 1
    %s69 = scalar_select %p66, %s67, %s68
    %p72 = pneg %p66
    %p73 = scmp.eq.s32.totalorder %s19, 3
    %p74 = por %p72, %p73
    %p75 = scmp.ne.s32.totalorder %s67, %s70
    %p76 = scmp.eq.s32.totalorder %s19, 0
    %p77 = por %p75, %p76
    %p78 = scmp.ne.s32.totalorder %s67, %s70
    %p79 = scmp.eq.s32.totalorder %s24, 3
    %p80 = por %p78, %p79
    %p81 = scmp.ne.s32.totalorder %s70, %s71
    %p82 = scmp.eq.s32.totalorder %s24, 0
    %p83 = por %p81, %p82
    %p84 = scmp.ne.s32.totalorder %s70, %s71
    %p85 = scmp.eq.s32.totalorder %s25, 3
    %p86 = por %p84, %p85
    %p88 = scmp.ne.s32.totalorder %s71, %s87
    %p89 = scmp.eq.s32.totalorder %s25, 0
    %p90 = por %p88, %p89
    %s91 = ssub.s32 %s27, %s34
    %p92 = scmp.eq.s32.totalorder %s91, 0
    %s94 = sadd.s32 %s93, 1
    %s95 = scalar_select %p92, %s93, %s94
    %p98 = pneg %p92
    %p99 = scmp.eq.s32.totalorder %s19, 3
    %p100 = por %p98, %p99
    %p101 = scmp.ne.s32.totalorder %s93, %s96
    %p102 = scmp.eq.s32.totalorder %s19, 0
    %p103 = por %p101, %p102
    %p104 = scmp.ne.s32.totalorder %s93, %s96
    %p105 = scmp.eq.s32.totalorder %s24, 3
    %p106 = por %p104, %p105
    %p107 = scmp.ne.s32.totalorder %s96, %s97
    %p108 = scmp.eq.s32.totalorder %s24, 0
    %p109 = por %p107, %p108
    %p110 = scmp.ne.s32.totalorder %s96, %s97
    %p111 = scmp.eq.s32.totalorder %s25, 3
    %p112 = por %p110, %p111
    %p114 = scmp.ne.s32.totalorder %s97, %s113
    %p115 = scmp.eq.s32.totalorder %s25, 0
    %p116 = por %p114, %p115
    %s117 = ssub.s32 %s27, %s34
    %p118 = scmp.eq.s32.totalorder %s117, 0
    %s120 = sadd.s32 %s119, 1
    %s121 = scalar_select %p118, %s119, %s120
    %p124 = pneg %p118
    %p125 = scmp.eq.s32.totalorder %s19, 3
    %p126 = por %p124, %p125
    %p127 = scmp.ne.s32.totalorder %s119, %s122
    %p128 = scmp.eq.s32.totalorder %s19, 0
    %p129 = por %p127, %p128
    %p130 = scmp.ne.s32.totalorder %s119, %s122
    %p131 = scmp.eq.s32.totalorder %s24, 3
    %p132 = por %p130, %p131
    %p133 = scmp.ne.s32.totalorder %s122, %s123
    %p134 = scmp.eq.s32.totalorder %s24, 0
    %p135 = por %p133, %p134
    %p136 = scmp.ne.s32.totalorder %s122, %s123
    %p137 = scmp.eq.s32.totalorder %s25, 3
    %p138 = por %p136, %p137
    %p140 = scmp.ne.s32.totalorder %s123, %s139
    %p141 = scmp.eq.s32.totalorder %s25, 0
    %p142 = por %p140, %p141
    %s143 = ssub.s32 %s27, %s34
    %p144 = scmp.eq.s32.totalorder %s143, 0
    %s146 = sadd.s32 %s145, 1
    %s147 = scalar_select %p144, %s145, %s146
    %p150 = pneg %p144
    %p151 = scmp.eq.s32.totalorder %s19, 3
    %p152 = por %p150, %p151
    %p153 = scmp.ne.s32.totalorder %s145, %s148
    %p154 = scmp.eq.s32.totalorder %s19, 0
    %p155 = por %p153, %p154
    %p156 = scmp.ne.s32.totalorder %s145, %s148
    %p157 = scmp.eq.s32.totalorder %s24, 3
    %p158 = por %p156, %p157
    %p159 = scmp.ne.s32.totalorder %s148, %s149
    %p160 = scmp.eq.s32.totalorder %s24, 0
    %p161 = por %p159, %p160
    %p162 = scmp.ne.s32.totalorder %s148, %s149
    %p163 = scmp.eq.s32.totalorder %s25, 3
    %p164 = por %p162, %p163
    %p166 = scmp.ne.s32.totalorder %s149, %s165
    %p167 = scmp.eq.s32.totalorder %s25, 0
    %p168 = por %p166, %p167
    %s169 = ssub.s32 %s27, %s34
    %p170 = scmp.eq.s32.totalorder %s169, 0
    %s172 = sadd.s32 %s171, 1
    %s173 = scalar_select %p170, %s171, %s172
    %p176 = pneg %p170
    %p177 = scmp.eq.s32.totalorder %s19, 3
    %p178 = por %p176, %p177
    %p179 = scmp.ne.s32.totalorder %s171, %s174
    %p180 = scmp.eq.s32.totalorder %s19, 0
    %p181 = por %p179, %p180
    %p182 = scmp.ne.s32.totalorder %s171, %s174
    %p183 = scmp.eq.s32.totalorder %s24, 3
    %p184 = por %p182, %p183
    %p185 = scmp.ne.s32.totalorder %s174, %s175
    %p186 = scmp.eq.s32.totalorder %s24, 0
    %p187 = por %p185, %p186
    %p188 = scmp.ne.s32.totalorder %s174, %s175
    %p189 = scmp.eq.s32.totalorder %s25, 3
    %p190 = por %p188, %p189
    %p192 = scmp.ne.s32.totalorder %s175, %s191
    %p193 = scmp.eq.s32.totalorder %s25, 0
    %p194 = por %p192, %p193
    %s195 = ssub.s32 %s27, %s34
    %p196 = scmp.eq.s32.totalorder %s195, 0
    %s198 = sadd.s32 %s197, 1
    %s199 = scalar_select %p196, %s197, %s198
    %p202 = pneg %p196
    %p203 = scmp.eq.s32.totalorder %s19, 3
    %p204 = por %p202, %p203
    %p205 = scmp.ne.s32.totalorder %s197, %s200
    %p206 = scmp.eq.s32.totalorder %s19, 0
    %p207 = por %p205, %p206
    %p208 = scmp.ne.s32.totalorder %s197, %s200
    %p209 = scmp.eq.s32.totalorder %s24, 3
    %p210 = por %p208, %p209
    %p211 = scmp.ne.s32.totalorder %s200, %s201
    %p212 = scmp.eq.s32.totalorder %s24, 0
    %p213 = por %p211, %p212
    %p214 = scmp.ne.s32.totalorder %s200, %s201
    %p215 = scmp.eq.s32.totalorder %s25, 3
    %p216 = por %p214, %p215
    %p218 = scmp.ne.s32.totalorder %s201, %s217
    %p219 = scmp.eq.s32.totalorder %s25, 0
    %p220 = por %p218, %p219
    %s221 = ssub.s32 %s27, %s34
    %p222 = scmp.eq.s32.totalorder %s221, 0
    %s224 = sadd.s32 %s223, 1
    %s225 = scalar_select %p222, %s223, %s224
    %p228 = pneg %p222
    %p229 = scmp.eq.s32.totalorder %s19, 3
    %p230 = por %p228, %p229
    %p231 = scmp.ne.s32.totalorder %s223, %s226
    %p232 = scmp.eq.s32.totalorder %s19, 0
    %p233 = por %p231, %p232
    %p234 = scmp.ne.s32.totalorder %s223, %s226
    %p235 = scmp.eq.s32.totalorder %s24, 3
    %p236 = por %p234, %p235
    %p237 = scmp.ne.s32.totalorder %s226, %s227
    %p238 = scmp.eq.s32.totalorder %s24, 0
    %p239 = por %p237, %p238
    %p240 = scmp.ne.s32.totalorder %s226, %s227
    %p241 = scmp.eq.s32.totalorder %s25, 3
    %p242 = por %p240, %p241
    %p244 = scmp.ne.s32.totalorder %s227, %s243
    %p245 = scmp.eq.s32.totalorder %s25, 0
    %p246 = por %p244, %p245
    %s247 = ssub.s32 %s27, %s34
    %p248 = scmp.eq.s32.totalorder %s247, 0
    %s250 = sadd.s32 %s249, 1
    %s251 = scalar_select %p248, %s249, %s250
    %p254 = pneg %p248
    %p255 = scmp.eq.s32.totalorder %s19, 3
    %p256 = por %p254, %p255
    %p257 = scmp.ne.s32.totalorder %s249, %s252
    %p258 = scmp.eq.s32.totalorder %s19, 0
    %p259 = por %p257, %p258
    %p260 = scmp.ne.s32.totalorder %s249, %s252
    %p261 = scmp.eq.s32.totalorder %s24, 3
    %p262 = por %p260, %p261
    %p263 = scmp.ne.s32.totalorder %s252, %s253
    %p264 = scmp.eq.s32.totalorder %s24, 0
    %p265 = por %p263, %p264
    %p266 = scmp.ne.s32.totalorder %s252, %s253
    %p267 = scmp.eq.s32.totalorder %s25, 3
    %p268 = por %p266, %p267
    %p270 = scmp.ne.s32.totalorder %s253, %s269
    %p271 = scmp.eq.s32.totalorder %s25, 0
    %p272 = por %p270, %p271
    %s273 = ssub.s32 %s27, %s34
    %p274 = scmp.eq.s32.totalorder %s273, 0
    %s276 = sadd.s32 %s275, 1
    %s277 = scalar_select %p274, %s275, %s276
    %p280 = pneg %p274
    %p281 = scmp.eq.s32.totalorder %s19, 3
    %p282 = por %p280, %p281
    %p283 = scmp.ne.s32.totalorder %s275, %s278
    %p284 = scmp.eq.s32.totalorder %s19, 0
    %p285 = por %p283, %p284
    %p286 = scmp.ne.s32.totalorder %s275, %s278
    %p287 = scmp.eq.s32.totalorder %s24, 3
    %p288 = por %p286, %p287
    %p289 = scmp.ne.s32.totalorder %s278, %s279
    %p290 = scmp.eq.s32.totalorder %s24, 0
    %p291 = por %p289, %p290
    %p292 = scmp.ne.s32.totalorder %s278, %s279
    %p293 = scmp.eq.s32.totalorder %s25, 3
    %p294 = por %p292, %p293
    %p296 = scmp.ne.s32.totalorder %s279, %s295
    %p297 = scmp.eq.s32.totalorder %s25, 0
    %p298 = por %p296, %p297
    %s299 = ssub.s32 %s27, %s34
    %p300 = scmp.eq.s32.totalorder %s299, 0
    %s302 = sadd.s32 %s301, 1
    %s303 = scalar_select %p300, %s301, %s302
    %p306 = pneg %p300
    %p307 = scmp.eq.s32.totalorder %s19, 3
    %p308 = por %p306, %p307
    %p309 = scmp.ne.s32.totalorder %s301, %s304
    %p310 = scmp.eq.s32.totalorder %s19, 0
    %p311 = por %p309, %p310
    %p312 = scmp.ne.s32.totalorder %s301, %s304
    %p313 = scmp.eq.s32.totalorder %s24, 3
    %p314 = por %p312, %p313
    %p315 = scmp.ne.s32.totalorder %s304, %s305
    %p316 = scmp.eq.s32.totalorder %s24, 0
    %p317 = por %p315, %p316
    %p318 = scmp.ne.s32.totalorder %s304, %s305
    %p319 = scmp.eq.s32.totalorder %s25, 3
    %p320 = por %p318, %p319
    %p322 = scmp.ne.s32.totalorder %s305, %s321
    %p323 = scmp.eq.s32.totalorder %s25, 0
    %p324 = por %p322, %p323
    %s325 = ssub.s32 %s27, %s34
    %p326 = scmp.eq.s32.totalorder %s325, 0
    %s328 = sadd.s32 %s327, 1
    %s329 = scalar_select %p326, %s327, %s328
    %p332 = pneg %p326
    %p333 = scmp.eq.s32.totalorder %s19, 3
    %p334 = por %p332, %p333
    %p335 = scmp.ne.s32.totalorder %s327, %s330
    %p336 = scmp.eq.s32.totalorder %s19, 0
    %p337 = por %p335, %p336
    %p338 = scmp.ne.s32.totalorder %s327, %s330
    %p339 = scmp.eq.s32.totalorder %s24, 3
    %p340 = por %p338, %p339
    %p341 = scmp.ne.s32.totalorder %s330, %s331
    %p342 = scmp.eq.s32.totalorder %s24, 0
    %p343 = por %p341, %p342
    %p344 = scmp.ne.s32.totalorder %s330, %s331
    %p345 = scmp.eq.s32.totalorder %s25, 3
    %p346 = por %p344, %p345
    %p348 = scmp.ne.s32.totalorder %s331, %s347
    %p349 = scmp.eq.s32.totalorder %s25, 0
    %p350 = por %p348, %p349
    %s351 = ssub.s32 %s27, %s34
    %p352 = scmp.eq.s32.totalorder %s351, 0
    %s354 = sadd.s32 %s353, 1
    %s355 = scalar_select %p352, %s353, %s354
    %p358 = pneg %p352
    %p359 = scmp.eq.s32.totalorder %s19, 3
    %p360 = por %p358, %p359
    %p361 = scmp.ne.s32.totalorder %s353, %s356
    %p362 = scmp.eq.s32.totalorder %s19, 0
    %p363 = por %p361, %p362
    %p364 = scmp.ne.s32.totalorder %s353, %s356
    %p365 = scmp.eq.s32.totalorder %s24, 3
    %p366 = por %p364, %p365
    %p367 = scmp.ne.s32.totalorder %s356, %s357
    %p368 = scmp.eq.s32.totalorder %s24, 0
    %p369 = por %p367, %p368
    %p370 = scmp.ne.s32.totalorder %s356, %s357
    %p371 = scmp.eq.s32.totalorder %s25, 3
    %p372 = por %p370, %p371
    %p374 = scmp.ne.s32.totalorder %s357, %s373
    %p375 = scmp.eq.s32.totalorder %s25, 0
    %p376 = por %p374, %p375
    %s377 = ssub.s32 %s26, %s38
    %p378 = scmp.eq.s32.totalorder %s377, 0
    %s380 = sadd.s32 %s379, 1
    %s381 = scalar_select %p378, %s379, %s380
    %p384 = pneg %p378
    %p385 = scmp.eq.s32.totalorder %s19, 3
    %p386 = por %p384, %p385
    %p387 = scmp.ne.s32.totalorder %s379, %s382
    %p388 = scmp.eq.s32.totalorder %s19, 0
    %p389 = por %p387, %p388
    %p390 = scmp.ne.s32.totalorder %s379, %s382
    %p391 = scmp.eq.s32.totalorder %s24, 3
    %p392 = por %p390, %p391
    %p393 = scmp.ne.s32.totalorder %s382, %s383
    %p394 = scmp.eq.s32.totalorder %s24, 0
    %p395 = por %p393, %p394
    %p396 = scmp.ne.s32.totalorder %s382, %s383
    %p397 = scmp.eq.s32.totalorder %s25, 3
    %p398 = por %p396, %p397
    %p400 = scmp.ne.s32.totalorder %s383, %s399
    %p401 = scmp.eq.s32.totalorder %s25, 0
    %p402 = por %p400, %p401
    %p403 = scmp.le.s32.totalorder 1, %s19
    %p404 = scmp.lt.s32.totalorder %s19, 5
    %p405 = pnand %p403, %p404
    %p406 = pneg %p405
    // Predicated region
    $region9: #{custom_transformer_forward.1} parent=5 // pred_check
      _
    $region10: #{custom_transformer_forward.1} parent=5 // pred_check_branch
      %408 = sbr.rel (%p405) target = $region12
    $region11: #{custom_transformer_forward.1} parent=5 // pred_region
      %s409 = ssub.s32 %s19, 1
    $region12: #{custom_transformer_forward.1} parent=5 // pred_fallthru
      _
    %p410 = scmp.lt.s32.totalorder %s19, 4
    // Predicated region
    $region13: #{custom_transformer_forward.1} parent=5 // pred_check
      %p411 = pneg %p410
    $region14: #{custom_transformer_forward.1} parent=5 // pred_check_branch
      %413 = sbr.rel (%p411) target = $region16
    $region15: #{custom_transformer_forward.1} parent=5 // pred_region
      // Predicated region
      $region17: #{custom_transformer_forward.1} parent=15 // pred_check
        %p414 = pneg %p51
      $region18: #{custom_transformer_forward.1} parent=15 // pred_check_branch
        %416 = sbr.rel (%p414) target = $region20
      $region19: #{custom_transformer_forward.1} parent=15 // pred_region
        %p417 = scmp.lt.s32.totalorder %s26, 1
        %s418 = scalar_select %p417, %s26, 1
        %s419 = smul.addr %s418, 8
        %s420 = scalar_lea.vmem %s0, %s419
      $region20: #{custom_transformer_forward.1} parent=15 // pred_fallthru
        _
      // Predicated region
      $region21: #{custom_transformer_forward.1} parent=15 // pred_check
        %p421 = pneg %p77
      $region22: #{custom_transformer_forward.1} parent=15 // pred_check_branch
        %423 = sbr.rel (%p421) target = $region24
      $region23: #{custom_transformer_forward.1} parent=15 // pred_region
        %p424 = scmp.lt.s32.totalorder %s27, 1
        %s425 = scalar_select %p424, %s27, 1
        %s426 = scalar_lea.vmem %s1, %s425
      $region24: #{custom_transformer_forward.1} parent=15 // pred_fallthru
        _
      // Predicated region
      $region25: #{custom_transformer_forward.1} parent=15 // pred_check
        %p427 = pneg %p103
      $region26: #{custom_transformer_forward.1} parent=15 // pred_check_branch
        %429 = sbr.rel (%p427) target = $region28
      $region27: #{custom_transformer_forward.1} parent=15 // pred_region
        %p430 = scmp.lt.s32.totalorder %s27, 1
        %s431 = scalar_select %p430, %s27, 1
        %s432 = scalar_lea.vmem %s2, %s431
      $region28: #{custom_transformer_forward.1} parent=15 // pred_fallthru
        _
      // Predicated region
      $region29: #{custom_transformer_forward.1} parent=15 // pred_check
        %p433 = pneg %p129
      $region30: #{custom_transformer_forward.1} parent=15 // pred_check_branch
        %435 = sbr.rel (%p433) target = $region32
      $region31: #{custom_transformer_forward.1} parent=15 // pred_region
        %p436 = scmp.lt.s32.totalorder %s27, 1
        %s437 = scalar_select %p436, %s27, 1
        %s438 = smul.addr %s437, 4
        %s439 = smul.addr %s438, 8
        %s440 = scalar_lea.vmem %s3, %s439
      $region32: #{custom_transformer_forward.1} parent=15 // pred_fallthru
        _
      // Predicated region
      $region33: #{custom_transformer_forward.1} parent=15 // pred_check
        %p441 = pneg %p155
      $region34: #{custom_transformer_forward.1} parent=15 // pred_check_branch
        %443 = sbr.rel (%p441) target = $region36
      $region35: #{custom_transformer_forward.1} parent=15 // pred_region
        %p444 = scmp.lt.s32.totalorder %s27, 1
        %s445 = scalar_select %p444, %s27, 1
        %s446 = scalar_lea.vmem %s4, %s445
      $region36: #{custom_transformer_forward.1} parent=15 // pred_fallthru
        _
      // Predicated region
      $region37: #{custom_transformer_forward.1} parent=15 // pred_check
        %p447 = pneg %p181
      $region38: #{custom_transformer_forward.1} parent=15 // pred_check_branch
        %449 = sbr.rel (%p447) target = $region40
      $region39: #{custom_transformer_forward.1} parent=15 // pred_region
        %p450 = scmp.lt.s32.totalorder %s27, 1
        %s451 = scalar_select %p450, %s27, 1
        %s452 = smul.addr %s451, 4
        %s453 = smul.addr %s452, 8
        %s454 = scalar_lea.vmem %s5, %s453
      $region40: #{custom_transformer_forward.1} parent=15 // pred_fallthru
        _
      // Predicated region
      $region41: #{custom_transformer_forward.1} parent=15 // pred_check
        %p455 = pneg %p207
      $region42: #{custom_transformer_forward.1} parent=15 // pred_check_branch
        %457 = sbr.rel (%p455) target = $region44
      $region43: #{custom_transformer_forward.1} parent=15 // pred_region
        %p458 = scmp.lt.s32.totalorder %s27, 1
        %s459 = scalar_select %p458, %s27, 1
        %s460 = scalar_lea.vmem %s6, %s459
      $region44: #{custom_transformer_forward.1} parent=15 // pred_fallthru
        _
      // Predicated region
      $region45: #{custom_transformer_forward.1} parent=15 // pred_check
        %p461 = pneg %p233
      $region46: #{custom_transformer_forward.1} parent=15 // pred_check_branch
        %463 = sbr.rel (%p461) target = $region48
      $region47: #{custom_transformer_forward.1} parent=15 // pred_region
        %p464 = scmp.lt.s32.totalorder %s27, 1
        %s465 = scalar_select %p464, %s27, 1
        %s466 = scalar_lea.vmem %s7, %s465
      $region48: #{custom_transformer_forward.1} parent=15 // pred_fallthru
        _
      // Predicated region
      $region49: #{custom_transformer_forward.1} parent=15 // pred_check
        %p467 = pneg %p259
      $region50: #{custom_transformer_forward.1} parent=15 // pred_check_branch
        %469 = sbr.rel (%p467) target = $region52
      $region51: #{custom_transformer_forward.1} parent=15 // pred_region
        %p470 = scmp.lt.s32.totalorder %s27, 1
        %s471 = scalar_select %p470, %s27, 1
        %s472 = scalar_lea.vmem %s8, %s471
      $region52: #{custom_transformer_forward.1} parent=15 // pred_fallthru
        _
      // Predicated region
      $region53: #{custom_transformer_forward.1} parent=15 // pred_check
        %p473 = pneg %p285
      $region54: #{custom_transformer_forward.1} parent=15 // pred_check_branch
        %475 = sbr.rel (%p473) target = $region56
      $region55: #{custom_transformer_forward.1} parent=15 // pred_region
        %p476 = scmp.lt.s32.totalorder %s27, 1
        %s477 = scalar_select %p476, %s27, 1
        %s478 = smul.addr %s477, 4
        %s479 = smul.addr %s478, 8
        %s480 = scalar_lea.vmem %s9, %s479
      $region56: #{custom_transformer_forward.1} parent=15 // pred_fallthru
        _
      // Predicated region
      $region57: #{custom_transformer_forward.1} parent=15 // pred_check
        %p481 = pneg %p311
      $region58: #{custom_transformer_forward.1} parent=15 // pred_check_branch
        %483 = sbr.rel (%p481) target = $region60
      $region59: #{custom_transformer_forward.1} parent=15 // pred_region
        %p484 = scmp.lt.s32.totalorder %s27, 1
        %s485 = scalar_select %p484, %s27, 1
        %s486 = scalar_lea.vmem %s10, %s485
      $region60: #{custom_transformer_forward.1} parent=15 // pred_fallthru
        _
      // Predicated region
      $region61: #{custom_transformer_forward.1} parent=15 // pred_check
        %p487 = pneg %p337
      $region62: #{custom_transformer_forward.1} parent=15 // pred_check_branch
        %489 = sbr.rel (%p487) target = $region64
      $region63: #{custom_transformer_forward.1} parent=15 // pred_region
        %p490 = scmp.lt.s32.totalorder %s27, 1
        %s491 = scalar_select %p490, %s27, 1
        %s492 = smul.addr %s491, 16
        %s493 = smul.addr %s492, 8
        %s494 = scalar_lea.vmem %s11, %s493
      $region64: #{custom_transformer_forward.1} parent=15 // pred_fallthru
        _
      // Predicated region
      $region65: #{custom_transformer_forward.1} parent=15 // pred_check
        %p495 = pneg %p363
      $region66: #{custom_transformer_forward.1} parent=15 // pred_check_branch
        %497 = sbr.rel (%p495) target = $region68
      $region67: #{custom_transformer_forward.1} parent=15 // pred_region
        %p498 = scmp.lt.s32.totalorder %s27, 1
        %s499 = scalar_select %p498, %s27, 1
        %s500 = scalar_lea.vmem %s12, %s499
      $region68: #{custom_transformer_forward.1} parent=15 // pred_fallthru
        _
    $region16: #{custom_transformer_forward.1} parent=5 // pred_fallthru
      _
    %p501 = scmp.le.s32.totalorder 1, %s19
    %p502 = scmp.lt.s32.totalorder %s19, 5
    %p503 = pnand %p501, %p502
    %p504 = pneg %p503
    // Predicated region
    $region69: #{custom_transformer_forward.1} parent=5 // pred_check
      _
    $region70: #{custom_transformer_forward.1} parent=5 // pred_check_branch
      %506 = sbr.rel (%p503) target = $region72
    $region71: #{custom_transformer_forward.1} parent=5 // pred_region
      %s507 = ssub.s32 %s19, 1
      %p508 = scmp.lt.s32.totalorder %s28, 1
      %s509 = scalar_select %p508, %s28, 1
      %s510 = smul.addr %s509, 8
      %s511 = scalar_lea.vmem %s0, %s510
      %p512 = pneg %p57
      %p513 = pneg %p54
      %p514 = scmp.lt.s32.totalorder %s29, 1
      %s515 = scalar_select %p514, %s29, 1
      %s516 = scalar_lea.vmem %s1, %s515
      %p517 = pneg %p83
      %p518 = pneg %p80
      %p519 = scmp.lt.s32.totalorder %s29, 1
      %s520 = scalar_select %p519, %s29, 1
      %s521 = scalar_lea.vmem %s2, %s520
      %p522 = pneg %p109
      %p523 = pneg %p106
      %p524 = scmp.lt.s32.totalorder %s29, 1
      %s525 = scalar_select %p524, %s29, 1
      %s526 = smul.addr %s525, 4
      %s527 = smul.addr %s526, 8
      %s528 = scalar_lea.vmem %s3, %s527
      %p529 = pneg %p135
      %p530 = pneg %p132
      %p531 = scmp.lt.s32.totalorder %s29, 1
      %s532 = scalar_select %p531, %s29, 1
      %s533 = scalar_lea.vmem %s4, %s532
      %p534 = pneg %p161
      %p535 = pneg %p158
      %p536 = scmp.lt.s32.totalorder %s29, 1
      %s537 = scalar_select %p536, %s29, 1
      %s538 = smul.addr %s537, 4
      %s539 = smul.addr %s538, 8
      %s540 = scalar_lea.vmem %s5, %s539
      %p541 = pneg %p187
      %p542 = pneg %p184
      %p543 = scmp.lt.s32.totalorder %s29, 1
      %s544 = scalar_select %p543, %s29, 1
      %s545 = scalar_lea.vmem %s6, %s544
      %p546 = pneg %p213
      %p547 = pneg %p210
      %p548 = scmp.lt.s32.totalorder %s29, 1
      %s549 = scalar_select %p548, %s29, 1
      %s550 = scalar_lea.vmem %s7, %s549
      %p551 = pneg %p239
      %p552 = pneg %p236
      %p553 = scmp.lt.s32.totalorder %s29, 1
      %s554 = scalar_select %p553, %s29, 1
      %s555 = scalar_lea.vmem %s8, %s554
      %p556 = pneg %p265
      %p557 = pneg %p262
      %p558 = scmp.lt.s32.totalorder %s29, 1
      %s559 = scalar_select %p558, %s29, 1
      %s560 = smul.addr %s559, 4
      %s561 = smul.addr %s560, 8
      %s562 = scalar_lea.vmem %s9, %s561
      %p563 = pneg %p291
      %p564 = pneg %p288
      %p565 = scmp.lt.s32.totalorder %s29, 1
      %s566 = scalar_select %p565, %s29, 1
      %s567 = scalar_lea.vmem %s10, %s566
      %p568 = pneg %p317
      %p569 = pneg %p314
      %p570 = scmp.lt.s32.totalorder %s29, 1
      %s571 = scalar_select %p570, %s29, 1
      %s572 = smul.addr %s571, 16
      %s573 = smul.addr %s572, 8
      %s574 = scalar_lea.vmem %s11, %s573
      %p575 = pneg %p343
      %p576 = pneg %p340
      %p577 = scmp.lt.s32.totalorder %s29, 1
      %s578 = scalar_select %p577, %s29, 1
      %s579 = scalar_lea.vmem %s12, %s578
      %p580 = pneg %p369
      %p581 = pneg %p366
      %p582 = pneg %p395
      %p583 = pneg %p392
      %p584 = scmp.lt.s32.totalorder %s28, 1
      %s585 = scalar_select %p584, %s28, 1
      %s586 = smul.addr %s585, 8
      %s587 = scalar_lea.vmem %s13, %s586
      %p588 = scmp.lt.s32.totalorder %s28, 1
      %s589 = scalar_select %p588, %s28, 1
      %s590 = smul.addr %s589, 8
      %s591 = scalar_lea.vmem %s0, %s590
      %p592 = scmp.lt.s32.totalorder %s29, 1
      %s593 = scalar_select %p592, %s29, 1
      %s594 = scalar_lea.vmem %s1, %s593
      %p595 = scmp.lt.s32.totalorder %s29, 1
      %s596 = scalar_select %p595, %s29, 1
      %s597 = scalar_lea.vmem %s2, %s596
      %p598 = scmp.lt.s32.totalorder %s29, 1
      %s599 = scalar_select %p598, %s29, 1
      %s600 = smul.addr %s599, 4
      %s601 = smul.addr %s600, 8
      %s602 = scalar_lea.vmem %s3, %s601
      %p603 = scmp.lt.s32.totalorder %s29, 1
      %s604 = scalar_select %p603, %s29, 1
      %s605 = scalar_lea.vmem %s4, %s604
      %p606 = scmp.lt.s32.totalorder %s29, 1
      %s607 = scalar_select %p606, %s29, 1
      %s608 = smul.addr %s607, 4
      %s609 = smul.addr %s608, 8
      %s610 = scalar_lea.vmem %s5, %s609
      %p611 = scmp.lt.s32.totalorder %s29, 1
      %s612 = scalar_select %p611, %s29, 1
      %s613 = scalar_lea.vmem %s6, %s612
      %p614 = scmp.lt.s32.totalorder %s29, 1
      %s615 = scalar_select %p614, %s29, 1
      %s616 = scalar_lea.vmem %s7, %s615
      %p617 = scmp.lt.s32.totalorder %s29, 1
      %s618 = scalar_select %p617, %s29, 1
      %s619 = scalar_lea.vmem %s8, %s618
      %p620 = scmp.lt.s32.totalorder %s29, 1
      %s621 = scalar_select %p620, %s29, 1
      %s622 = smul.addr %s621, 4
      %s623 = smul.addr %s622, 8
      %s624 = scalar_lea.vmem %s9, %s623
      %p625 = scmp.lt.s32.totalorder %s29, 1
      %s626 = scalar_select %p625, %s29, 1
      %s627 = scalar_lea.vmem %s10, %s626
      %p628 = scmp.lt.s32.totalorder %s29, 1
      %s629 = scalar_select %p628, %s29, 1
      %s630 = smul.addr %s629, 16
      %s631 = smul.addr %s630, 8
      %s632 = scalar_lea.vmem %s11, %s631
      %p633 = scmp.lt.s32.totalorder %s29, 1
      %s634 = scalar_select %p633, %s29, 1
      %s635 = scalar_lea.vmem %s12, %s634
      %p636 = scmp.lt.s32.totalorder %s28, 1
      %s637 = scalar_select %p636, %s28, 1
      %s638 = smul.addr %s637, 8
      %s639 = scalar_lea.vmem %s13, %s638
      %p640 = scmp.eq.s32.totalorder %s29, 0
      // Predicated region
      $region73: #{custom_transformer_forward.1} parent=71 // pred_check
        %p641 = pneg %p640
      $region74: #{custom_transformer_forward.1} parent=71 // pred_check_branch
        %643 = sbr.rel (%p641) target = $region76
      $region75: #{custom_transformer_forward.1} parent=71 // pred_region
        %v644 = vld [vmem:[%s591] sm:$0xff]
        %vm645 = vcmask 261120
        %646 = vst.msk [vmem:[%s639] sm:$0xff] %vm645, %v644
      $region76: #{custom_transformer_forward.1} parent=71 // pred_fallthru
        _
      %v647 = vld [vmem:[%s639] sm:$0xff]
      %v648 = vld [vmem:[%s594] sm:$0x1]
      %v649 = vld [vmem:[%s597] sm:$0x1]
      %vm650 = vcmask 261120
      %v651 = vsel %vm650, %v647, 0.0
      %652 = vadd.xlane.f32.xlu0 %v651
      %v653 = vpop.xlane.xlu0 %652
      %v654 = vrcp.pop 32.0
      %v655 = vmul.f32 %v653, %v654
      %v656 = vsub.f32 %v647, %v655
      %v657 = vmul.f32 %v656, %v656
      %v658 = vsel %vm650, %v657, 0.0
      %659 = vadd.xlane.f32.xlu0 %v658
      %v660 = vpop.xlane.xlu0 %659
      %v661 = vmul.f32 %v660, %v654
      %v662 = vadd.f32 %v661, 1e-05
      %v663 = vrsqrt.pop %v662
      %v664 = vmul.f32 %v656, %v663
      %v666 = vlaneseq
      %v667 = vshrl.u32 %v666, 7
      %v668 = vsub.s32 0, %v667
      %v669 = vrot.slane %v648, %v668
      %v671 = vmul.f32 %v664, %v669
      %v673 = vlaneseq
      %v674 = vshrl.u32 %v673, 7
      %v675 = vsub.s32 0, %v674
      %v676 = vrot.slane %v649, %v675
      %v678 = vadd.f32 %v671, %v676
      %v679 = vld [vmem:[%s602] sm:$0xff]
      %v680 = vld [vmem:[%s602 + $0x8] sm:$0xff]
      %v681 = vld [vmem:[%s602 + $0x10] sm:$0xff]
      %v682 = vld [vmem:[%s602 + $0x18] sm:$0xff]
      %v683 = vld [vmem:[%s605] sm:$0x1]
      %v685 = vlaneseq
      %v686 = vshrl.u32 %v685, 7
      %v687 = vsub.s32 0, %v686
      %v688 = vrot.slane %v683, %v687
      %v691 = vsel %vm650, %v678, 0
      %693 = vmatprep.subr.mxu0 0.0
      %694 = vmatpush1.msra.mxu0 %v679
      %695 = vmatprep.subr.mxu0 0.0
      %696 = vmatpush1.msra.mxu0 %v680
      %697 = vmatprep.subr.mxu0 0.0
      %698 = vmatpush1.msra.mxu0 %v681
      %699 = vmatprep.subr.mxu0 0.0
      %700 = vmatpush1.msra.mxu0 %v682
      %701 = vmatprep.subr.mxu0 0.0
      %702 = vmatpush1.msra.mxu0 0.0
      %703 = vmatprep.subr.mxu0 0.0
      %704 = vmatpush1.msra.mxu0 0.0
      %705 = vmatprep.subr.mxu0 0.0
      %706 = vmatpush1.msra.mxu0 0.0
      %707 = vmatprep.subr.mxu0 0.0
      %708 = vmatpush1.msra.mxu0 0.0
      %709 = vmatprep.subr.mxu0 0.0
      %710 = vmatpush1.msra.mxu0 0.0
      %711 = vmatprep.subr.mxu0 0.0
      %712 = vmatpush1.msra.mxu0 0.0
      %713 = vmatprep.subr.mxu0 0.0
      %714 = vmatpush1.msra.mxu0 0.0
      %715 = vmatprep.subr.mxu0 0.0
      %716 = vmatpush1.msra.mxu0 0.0
      %717 = vmatprep.subr.mxu0 0.0
      %718 = vmatpush1.msra.mxu0 0.0
      %719 = vmatprep.subr.mxu0 0.0
      %720 = vmatpush1.msra.mxu0 0.0
      %721 = vmatprep.subr.mxu0 0.0
      %722 = vmatpush1.msra.mxu0 0.0
      %723 = vmatprep.subr.mxu0 0.0
      %724 = vmatpush1.msra.mxu0 0.0
      %725 = vmatprep.subr.mxu0 0.0
      %726 = vmatpush1.msra.mxu0 0.0
      %727 = vmatprep.subr.mxu0 0.0
      %728 = vmatpush1.msra.mxu0 0.0
      %729 = vmatprep.subr.mxu0 0.0
      %730 = vmatpush1.msra.mxu0 0.0
      %731 = vmatprep.subr.mxu0 0.0
      %732 = vmatpush1.msra.mxu0 0.0
      %733 = vmatprep.subr.mxu0 0.0
      %734 = vmatpush1.msra.mxu0 0.0
      %735 = vmatprep.subr.mxu0 0.0
      %736 = vmatpush1.msra.mxu0 0.0
      %737 = vmatprep.subr.mxu0 0.0
      %738 = vmatpush1.msra.mxu0 0.0
      %739 = vmatprep.subr.mxu0 0.0
      %740 = vmatpush1.msra.mxu0 0.0
      %741 = vmatprep.subr.mxu0 0.0
      %742 = vmatpush1.msra.mxu0 0.0
      %743 = vmatprep.subr.mxu0 0.0
      %744 = vmatpush1.msra.mxu0 0.0
      %745 = vmatprep.subr.mxu0 0.0
      %746 = vmatpush1.msra.mxu0 0.0
      %747 = vmatprep.subr.mxu0 0.0
      %748 = vmatpush1.msra.mxu0 0.0
      %749 = vmatprep.subr.mxu0 0.0
      %750 = vmatpush1.msra.mxu0 0.0
      %751 = vmatprep.subr.mxu0 0.0
      %752 = vmatpush1.msra.mxu0 0.0
      %753 = vmatprep.subr.mxu0 0.0
      %754 = vmatpush1.msra.mxu0 0.0
      %755 = vmatprep.subr.mxu0 0.0
      %756 = vmatpush1.msra.mxu0 0.0
      %757 = vmatprep.mubr.f32.mxu0 0.0
      %758 = vmatmul.mubr.f32.gmra.mrb[0].mxu0 %v691
      %v759 = vpop.f32.mrb[0].mxu0
      %v760 = vadd.f32 %v688, %v759
      %v761 = vpop.f32.mrb[0].mxu0
      %762 = vdwg.mxu0
      %v763 = vld [vmem:[%s610] sm:$0xff]
      %v764 = vld [vmem:[%s610 + $0x8] sm:$0xff]
      %v765 = vld [vmem:[%s610 + $0x10] sm:$0xff]
      %v766 = vld [vmem:[%s610 + $0x18] sm:$0xff]
      %768 = vrot.lane.b32.xlu0 %v760, 96
      %v769 = vpop.permute.xlu0 %768
      %vm770 = vcmask 64512
      %v771 = vsel %vm770, %v760, 0
      %v773 = vsel %vm770, %v769, 0
      %775 = vmatprep.subr.mxu0 0.0
      %776 = vmatpush1.xpose.msra.mxu0 %v773
      %777 = vmatprep.subr.mxu0 0.0
      %778 = vmatpush1.xpose.msra.mxu0 0.0
      %779 = vmatprep.subr.mxu0 0.0
      %780 = vmatpush1.xpose.msra.mxu0 0.0
      %781 = vmatprep.subr.mxu0 0.0
      %782 = vmatpush1.xpose.msra.mxu0 0.0
      %783 = vmatprep.subr.mxu0 0.0
      %784 = vmatpush1.xpose.msra.mxu0 0.0
      %785 = vmatprep.subr.mxu0 0.0
      %786 = vmatpush1.xpose.msra.mxu0 0.0
      %787 = vmatprep.subr.mxu0 0.0
      %788 = vmatpush1.xpose.msra.mxu0 0.0
      %789 = vmatprep.subr.mxu0 0.0
      %790 = vmatpush1.xpose.msra.mxu0 0.0
      %791 = vmatprep.subr.mxu0 0.0
      %792 = vmatpush1.xpose.msra.mxu0 0.0
      %793 = vmatprep.subr.mxu0 0.0
      %794 = vmatpush1.xpose.msra.mxu0 0.0
      %795 = vmatprep.subr.mxu0 0.0
      %796 = vmatpush1.xpose.msra.mxu0 0.0
      %797 = vmatprep.subr.mxu0 0.0
      %798 = vmatpush1.xpose.msra.mxu0 0.0
      %799 = vmatprep.subr.mxu0 0.0
      %800 = vmatpush1.xpose.msra.mxu0 0.0
      %801 = vmatprep.subr.mxu0 0.0
      %802 = vmatpush1.xpose.msra.mxu0 0.0
      %803 = vmatprep.subr.mxu0 0.0
      %804 = vmatpush1.xpose.msra.mxu0 0.0
      %805 = vmatprep.subr.mxu0 0.0
      %806 = vmatpush1.xpose.msra.mxu0 0.0
      %807 = vmatprep.subr.mxu0 0.0
      %808 = vmatpush1.xpose.msra.mxu0 0.0
      %809 = vmatprep.subr.mxu0 0.0
      %810 = vmatpush1.xpose.msra.mxu0 0.0
      %811 = vmatprep.subr.mxu0 0.0
      %812 = vmatpush1.xpose.msra.mxu0 0.0
      %813 = vmatprep.subr.mxu0 0.0
      %814 = vmatpush1.xpose.msra.mxu0 0.0
      %815 = vmatprep.subr.mxu0 0.0
      %816 = vmatpush1.xpose.msra.mxu0 0.0
      %817 = vmatprep.subr.mxu0 0.0
      %818 = vmatpush1.xpose.msra.mxu0 0.0
      %819 = vmatprep.subr.mxu0 0.0
      %820 = vmatpush1.xpose.msra.mxu0 0.0
      %821 = vmatprep.subr.mxu0 0.0
      %822 = vmatpush1.xpose.msra.mxu0 0.0
      %823 = vmatprep.subr.mxu0 0.0
      %824 = vmatpush1.xpose.msra.mxu0 0.0
      %825 = vmatprep.subr.mxu0 0.0
      %826 = vmatpush1.xpose.msra.mxu0 0.0
      %827 = vmatprep.subr.mxu0 0.0
      %828 = vmatpush1.xpose.msra.mxu0 0.0
      %829 = vmatprep.subr.mxu0 0.0
      %830 = vmatpush1.xpose.msra.mxu0 0.0
      %831 = vmatprep.subr.mxu0 0.0
      %832 = vmatpush1.xpose.msra.mxu0 0.0
      %833 = vmatprep.subr.mxu0 0.0
      %834 = vmatpush1.xpose.msra.mxu0 0.0
      %835 = vmatprep.subr.mxu0 0.0
      %836 = vmatpush1.xpose.msra.mxu0 0.0
      %837 = vmatprep.subr.mxu0 0.0
      %838 = vmatpush1.xpose.msra.mxu0 0.0
      %839 = vmatprep.mubr.f32.mxu0 0.0
      %840 = vmatmul.mubr.f32.gmra.mrb[0].mxu0 %v771
      %v841 = vpop.f32.mrb[0].mxu0
      %v842 = vadd.f32 0.0, %v841
      %v843 = vpop.f32.mrb[0].mxu0
      %844 = vdwg.mxu0
      %v845 = vsel %vm770, %v842, -inf
      %846 = vmax.xlane.f32.xlu0 %v845
      %v847 = vpop.xlane.xlu0 %846
      %v848 = vsub.f32 %v842, %v847
      %v849 = vmul.f32 %v848, 1.442695
      %v850 = vpow.pop %v849
      %v851 = vsel %vm770, %v850, 0.0
      %852 = vadd.xlane.f32.xlu0 %v851
      %v853 = vpop.xlane.xlu0 %852
      %v854 = vrcp.pop %v853
      %v855 = vmul.f32 %v853, %v854
      %v856 = vsub.f32 2.0, %v855
      %v857 = vmul.f32 %v854, %v856
      %v858 = vmul.f32 %v850, %v857
      %859 = vrot.lane.b32.xlu0 %v760, 64
      %v860 = vpop.permute.xlu0 %859
      %v863 = vsel %vm770, %v858, 0
      %865 = vmatprep.subr.mxu0 0.0
      %866 = vmatpush1.msra.mxu0 %v860
      %867 = vmatprep.subr.mxu0 0.0
      %868 = vmatpush1.msra.mxu0 0.0
      %869 = vmatprep.subr.mxu0 0.0
      %870 = vmatpush1.msra.mxu0 0.0
      %871 = vmatprep.subr.mxu0 0.0
      %872 = vmatpush1.msra.mxu0 0.0
      %873 = vmatprep.subr.mxu0 0.0
      %874 = vmatpush1.msra.mxu0 0.0
      %875 = vmatprep.subr.mxu0 0.0
      %876 = vmatpush1.msra.mxu0 0.0
      %877 = vmatprep.subr.mxu0 0.0
      %878 = vmatpush1.msra.mxu0 0.0
      %879 = vmatprep.subr.mxu0 0.0
      %880 = vmatpush1.msra.mxu0 0.0
      %881 = vmatprep.subr.mxu0 0.0
      %882 = vmatpush1.msra.mxu0 0.0
      %883 = vmatprep.subr.mxu0 0.0
      %884 = vmatpush1.msra.mxu0 0.0
      %885 = vmatprep.subr.mxu0 0.0
      %886 = vmatpush1.msra.mxu0 0.0
      %887 = vmatprep.subr.mxu0 0.0
      %888 = vmatpush1.msra.mxu0 0.0
      %889 = vmatprep.subr.mxu0 0.0
      %890 = vmatpush1.msra.mxu0 0.0
      %891 = vmatprep.subr.mxu0 0.0
      %892 = vmatpush1.msra.mxu0 0.0
      %893 = vmatprep.subr.mxu0 0.0
      %894 = vmatpush1.msra.mxu0 0.0
      %895 = vmatprep.subr.mxu0 0.0
      %896 = vmatpush1.msra.mxu0 0.0
      %897 = vmatprep.subr.mxu0 0.0
      %898 = vmatpush1.msra.mxu0 0.0
      %899 = vmatprep.subr.mxu0 0.0
      %900 = vmatpush1.msra.mxu0 0.0
      %901 = vmatprep.subr.mxu0 0.0
      %902 = vmatpush1.msra.mxu0 0.0
      %903 = vmatprep.subr.mxu0 0.0
      %904 = vmatpush1.msra.mxu0 0.0
      %905 = vmatprep.subr.mxu0 0.0
      %906 = vmatpush1.msra.mxu0 0.0
      %907 = vmatprep.subr.mxu0 0.0
      %908 = vmatpush1.msra.mxu0 0.0
      %909 = vmatprep.subr.mxu0 0.0
      %910 = vmatpush1.msra.mxu0 0.0
      %911 = vmatprep.subr.mxu0 0.0
      %912 = vmatpush1.msra.mxu0 0.0
      %913 = vmatprep.subr.mxu0 0.0
      %914 = vmatpush1.msra.mxu0 0.0
      %915 = vmatprep.subr.mxu0 0.0
      %916 = vmatpush1.msra.mxu0 0.0
      %917 = vmatprep.subr.mxu0 0.0
      %918 = vmatpush1.msra.mxu0 0.0
      %919 = vmatprep.subr.mxu0 0.0
      %920 = vmatpush1.msra.mxu0 0.0
      %921 = vmatprep.subr.mxu0 0.0
      %922 = vmatpush1.msra.mxu0 0.0
      %923 = vmatprep.subr.mxu0 0.0
      %924 = vmatpush1.msra.mxu0 0.0
      %925 = vmatprep.subr.mxu0 0.0
      %926 = vmatpush1.msra.mxu0 0.0
      %927 = vmatprep.subr.mxu0 0.0
      %928 = vmatpush1.msra.mxu0 0.0
      %929 = vmatprep.mubr.f32.mxu0 0.0
      %930 = vmatmul.mubr.f32.gmra.mrb[0].mxu0 %v863
      %v931 = vpop.f32.mrb[0].mxu0
      %v932 = vadd.f32 0.0, %v931
      %v933 = vpop.f32.mrb[0].mxu0
      %934 = vdwg.mxu0
      %935 = vrot.lane.b32.xlu0 %v760, 120
      %v936 = vpop.permute.xlu0 %935
      %937 = vrot.lane.b32.xlu0 %v760, 88
      %v938 = vpop.permute.xlu0 %937
      %v939 = vsel %vm770, %v936, 0
      %v941 = vsel %vm770, %v938, 0
      %943 = vmatprep.subr.mxu0 0.0
      %944 = vmatpush1.xpose.msra.mxu0 %v941
      %945 = vmatprep.subr.mxu0 0.0
      %946 = vmatpush1.xpose.msra.mxu0 0.0
      %947 = vmatprep.subr.mxu0 0.0
      %948 = vmatpush1.xpose.msra.mxu0 0.0
      %949 = vmatprep.subr.mxu0 0.0
      %950 = vmatpush1.xpose.msra.mxu0 0.0
      %951 = vmatprep.subr.mxu0 0.0
      %952 = vmatpush1.xpose.msra.mxu0 0.0
      %953 = vmatprep.subr.mxu0 0.0
      %954 = vmatpush1.xpose.msra.mxu0 0.0
      %955 = vmatprep.subr.mxu0 0.0
      %956 = vmatpush1.xpose.msra.mxu0 0.0
      %957 = vmatprep.subr.mxu0 0.0
      %958 = vmatpush1.xpose.msra.mxu0 0.0
      %959 = vmatprep.subr.mxu0 0.0
      %960 = vmatpush1.xpose.msra.mxu0 0.0
      %961 = vmatprep.subr.mxu0 0.0
      %962 = vmatpush1.xpose.msra.mxu0 0.0
      %963 = vmatprep.subr.mxu0 0.0
      %964 = vmatpush1.xpose.msra.mxu0 0.0
      %965 = vmatprep.subr.mxu0 0.0
      %966 = vmatpush1.xpose.msra.mxu0 0.0
      %967 = vmatprep.subr.mxu0 0.0
      %968 = vmatpush1.xpose.msra.mxu0 0.0
      %969 = vmatprep.subr.mxu0 0.0
      %970 = vmatpush1.xpose.msra.mxu0 0.0
      %971 = vmatprep.subr.mxu0 0.0
      %972 = vmatpush1.xpose.msra.mxu0 0.0
      %973 = vmatprep.subr.mxu0 0.0
      %974 = vmatpush1.xpose.msra.mxu0 0.0
      %975 = vmatprep.subr.mxu0 0.0
      %976 = vmatpush1.xpose.msra.mxu0 0.0
      %977 = vmatprep.subr.mxu0 0.0
      %978 = vmatpush1.xpose.msra.mxu0 0.0
      %979 = vmatprep.subr.mxu0 0.0
      %980 = vmatpush1.xpose.msra.mxu0 0.0
      %981 = vmatprep.subr.mxu0 0.0
      %982 = vmatpush1.xpose.msra.mxu0 0.0
      %983 = vmatprep.subr.mxu0 0.0
      %984 = vmatpush1.xpose.msra.mxu0 0.0
      %985 = vmatprep.subr.mxu0 0.0
      %986 = vmatpush1.xpose.msra.mxu0 0.0
      %987 = vmatprep.subr.mxu0 0.0
      %988 = vmatpush1.xpose.msra.mxu0 0.0
      %989 = vmatprep.subr.mxu0 0.0
      %990 = vmatpush1.xpose.msra.mxu0 0.0
      %991 = vmatprep.subr.mxu0 0.0
      %992 = vmatpush1.xpose.msra.mxu0 0.0
      %993 = vmatprep.subr.mxu0 0.0
      %994 = vmatpush1.xpose.msra.mxu0 0.0
      %995 = vmatprep.subr.mxu0 0.0
      %996 = vmatpush1.xpose.msra.mxu0 0.0
      %997 = vmatprep.subr.mxu0 0.0
      %998 = vmatpush1.xpose.msra.mxu0 0.0
      %999 = vmatprep.subr.mxu0 0.0
      %1000 = vmatpush1.xpose.msra.mxu0 0.0
      %1001 = vmatprep.subr.mxu0 0.0
      %1002 = vmatpush1.xpose.msra.mxu0 0.0
      %1003 = vmatprep.subr.mxu0 0.0
      %1004 = vmatpush1.xpose.msra.mxu0 0.0
      %1005 = vmatprep.subr.mxu0 0.0
      %1006 = vmatpush1.xpose.msra.mxu0 0.0
      %1007 = vmatprep.mubr.f32.mxu0 0.0
      %1008 = vmatmul.mubr.f32.gmra.mrb[0].mxu0 %v939
      %v1009 = vpop.f32.mrb[0].mxu0
      %v1010 = vadd.f32 0.0, %v1009
      %v1011 = vpop.f32.mrb[0].mxu0
      %1012 = vdwg.mxu0
      %v1013 = vsel %vm770, %v1010, -inf
      %1014 = vmax.xlane.f32.xlu0 %v1013
      %v1015 = vpop.xlane.xlu0 %1014
      %v1016 = vsub.f32 %v1010, %v1015
      %v1017 = vmul.f32 %v1016, 1.442695
      %v1018 = vpow.pop %v1017
      %v1019 = vsel %vm770, %v1018, 0.0
      %1020 = vadd.xlane.f32.xlu0 %v1019
      %v1021 = vpop.xlane.xlu0 %1020
      %v1022 = vrcp.pop %v1021
      %v1023 = vmul.f32 %v1021, %v1022
      %v1024 = vsub.f32 2.0, %v1023
      %v1025 = vmul.f32 %v1022, %v1024
      %v1026 = vmul.f32 %v1018, %v1025
      %1027 = vrot.lane.b32.xlu0 %v760, 56
      %v1028 = vpop.permute.xlu0 %1027
      %v1031 = vsel %vm770, %v1026, 0
      %1033 = vmatprep.subr.mxu0 0.0
      %1034 = vmatpush1.msra.mxu0 %v1028
      %1035 = vmatprep.subr.mxu0 0.0
      %1036 = vmatpush1.msra.mxu0 0.0
      %1037 = vmatprep.subr.mxu0 0.0
      %1038 = vmatpush1.msra.mxu0 0.0
      %1039 = vmatprep.subr.mxu0 0.0
      %1040 = vmatpush1.msra.mxu0 0.0
      %1041 = vmatprep.subr.mxu0 0.0
      %1042 = vmatpush1.msra.mxu0 0.0
      %1043 = vmatprep.subr.mxu0 0.0
      %1044 = vmatpush1.msra.mxu0 0.0
      %1045 = vmatprep.subr.mxu0 0.0
      %1046 = vmatpush1.msra.mxu0 0.0
      %1047 = vmatprep.subr.mxu0 0.0
      %1048 = vmatpush1.msra.mxu0 0.0
      %1049 = vmatprep.subr.mxu0 0.0
      %1050 = vmatpush1.msra.mxu0 0.0
      %1051 = vmatprep.subr.mxu0 0.0
      %1052 = vmatpush1.msra.mxu0 0.0
      %1053 = vmatprep.subr.mxu0 0.0
      %1054 = vmatpush1.msra.mxu0 0.0
      %1055 = vmatprep.subr.mxu0 0.0
      %1056 = vmatpush1.msra.mxu0 0.0
      %1057 = vmatprep.subr.mxu0 0.0
      %1058 = vmatpush1.msra.mxu0 0.0
      %1059 = vmatprep.subr.mxu0 0.0
      %1060 = vmatpush1.msra.mxu0 0.0
      %1061 = vmatprep.subr.mxu0 0.0
      %1062 = vmatpush1.msra.mxu0 0.0
      %1063 = vmatprep.subr.mxu0 0.0
      %1064 = vmatpush1.msra.mxu0 0.0
      %1065 = vmatprep.subr.mxu0 0.0
      %1066 = vmatpush1.msra.mxu0 0.0
      %1067 = vmatprep.subr.mxu0 0.0
      %1068 = vmatpush1.msra.mxu0 0.0
      %1069 = vmatprep.subr.mxu0 0.0
      %1070 = vmatpush1.msra.mxu0 0.0
      %1071 = vmatprep.subr.mxu0 0.0
      %1072 = vmatpush1.msra.mxu0 0.0
      %1073 = vmatprep.subr.mxu0 0.0
      %1074 = vmatpush1.msra.mxu0 0.0
      %1075 = vmatprep.subr.mxu0 0.0
      %1076 = vmatpush1.msra.mxu0 0.0
      %1077 = vmatprep.subr.mxu0 0.0
      %1078 = vmatpush1.msra.mxu0 0.0
      %1079 = vmatprep.subr.mxu0 0.0
      %1080 = vmatpush1.msra.mxu0 0.0
      %1081 = vmatprep.subr.mxu0 0.0
      %1082 = vmatpush1.msra.mxu0 0.0
      %1083 = vmatprep.subr.mxu0 0.0
      %1084 = vmatpush1.msra.mxu0 0.0
      %1085 = vmatprep.subr.mxu0 0.0
      %1086 = vmatpush1.msra.mxu0 0.0
      %1087 = vmatprep.subr.mxu0 0.0
      %1088 = vmatpush1.msra.mxu0 0.0
      %1089 = vmatprep.subr.mxu0 0.0
      %1090 = vmatpush1.msra.mxu0 0.0
      %1091 = vmatprep.subr.mxu0 0.0
      %1092 = vmatpush1.msra.mxu0 0.0
      %1093 = vmatprep.subr.mxu0 0.0
      %1094 = vmatpush1.msra.mxu0 0.0
      %1095 = vmatprep.subr.mxu0 0.0
      %1096 = vmatpush1.msra.mxu0 0.0
      %1097 = vmatprep.mubr.f32.mxu0 0.0
      %1098 = vmatmul.mubr.f32.gmra.mrb[0].mxu0 %v1031
      %v1099 = vpop.f32.mrb[0].mxu0
      %v1100 = vadd.f32 0.0, %v1099
      %v1101 = vpop.f32.mrb[0].mxu0
      %1102 = vdwg.mxu0
      %v1104 = vsel %vm770, %v1100, 0
      %1106 = vmatprep.subr.mxu0 0.0
      %1107 = vmatpush1.msra.mxu0 %v764
      %1108 = vmatprep.subr.mxu0 0.0
      %1109 = vmatpush1.msra.mxu0 0.0
      %1110 = vmatprep.subr.mxu0 0.0
      %1111 = vmatpush1.msra.mxu0 0.0
      %1112 = vmatprep.subr.mxu0 0.0
      %1113 = vmatpush1.msra.mxu0 0.0
      %1114 = vmatprep.subr.mxu0 0.0
      %1115 = vmatpush1.msra.mxu0 0.0
      %1116 = vmatprep.subr.mxu0 0.0
      %1117 = vmatpush1.msra.mxu0 0.0
      %1118 = vmatprep.subr.mxu0 0.0
      %1119 = vmatpush1.msra.mxu0 0.0
      %1120 = vmatprep.subr.mxu0 0.0
      %1121 = vmatpush1.msra.mxu0 0.0
      %1122 = vmatprep.subr.mxu0 0.0
      %1123 = vmatpush1.msra.mxu0 0.0
      %1124 = vmatprep.subr.mxu0 0.0
      %1125 = vmatpush1.msra.mxu0 0.0
      %1126 = vmatprep.subr.mxu0 0.0
      %1127 = vmatpush1.msra.mxu0 0.0
      %1128 = vmatprep.subr.mxu0 0.0
      %1129 = vmatpush1.msra.mxu0 0.0
      %1130 = vmatprep.subr.mxu0 0.0
      %1131 = vmatpush1.msra.mxu0 0.0
      %1132 = vmatprep.subr.mxu0 0.0
      %1133 = vmatpush1.msra.mxu0 0.0
      %1134 = vmatprep.subr.mxu0 0.0
      %1135 = vmatpush1.msra.mxu0 0.0
      %1136 = vmatprep.subr.mxu0 0.0
      %1137 = vmatpush1.msra.mxu0 0.0
      %1138 = vmatprep.subr.mxu0 0.0
      %1139 = vmatpush1.msra.mxu0 0.0
      %1140 = vmatprep.subr.mxu0 0.0
      %1141 = vmatpush1.msra.mxu0 0.0
      %1142 = vmatprep.subr.mxu0 0.0
      %1143 = vmatpush1.msra.mxu0 0.0
      %1144 = vmatprep.subr.mxu0 0.0
      %1145 = vmatpush1.msra.mxu0 0.0
      %1146 = vmatprep.subr.mxu0 0.0
      %1147 = vmatpush1.msra.mxu0 0.0
      %1148 = vmatprep.subr.mxu0 0.0
      %1149 = vmatpush1.msra.mxu0 0.0
      %1150 = vmatprep.subr.mxu0 0.0
      %1151 = vmatpush1.msra.mxu0 0.0
      %1152 = vmatprep.subr.mxu0 0.0
      %1153 = vmatpush1.msra.mxu0 0.0
      %1154 = vmatprep.subr.mxu0 0.0
      %1155 = vmatpush1.msra.mxu0 0.0
      %1156 = vmatprep.subr.mxu0 0.0
      %1157 = vmatpush1.msra.mxu0 0.0
      %1158 = vmatprep.subr.mxu0 0.0
      %1159 = vmatpush1.msra.mxu0 0.0
      %1160 = vmatprep.subr.mxu0 0.0
      %1161 = vmatpush1.msra.mxu0 0.0
      %1162 = vmatprep.subr.mxu0 0.0
      %1163 = vmatpush1.msra.mxu0 0.0
      %1164 = vmatprep.subr.mxu0 0.0
      %1165 = vmatpush1.msra.mxu0 0.0
      %1166 = vmatprep.subr.mxu0 0.0
      %1167 = vmatpush1.msra.mxu0 0.0
      %1168 = vmatprep.subr.mxu0 0.0
      %1169 = vmatpush1.msra.mxu0 0.0
      %1170 = vmatprep.mubr.f32.mxu0 0.0
      %1171 = vmatmul.mubr.f32.gmra.mrb[0].mxu0 %v1104
      %v1172 = vpop.f32.mrb[0].mxu0
      %v1173 = vadd.f32 0.0, %v1172
      %v1174 = vpop.f32.mrb[0].mxu0
      %1175 = vdwg.mxu0
      %v1177 = vsel %vm770, %v932, 0
      %1179 = vmatprep.subr.mxu0 0.0
      %1180 = vmatpush1.msra.mxu0 %v763
      %1181 = vmatprep.subr.mxu0 0.0
      %1182 = vmatpush1.msra.mxu0 0.0
      %1183 = vmatprep.subr.mxu0 0.0
      %1184 = vmatpush1.msra.mxu0 0.0
      %1185 = vmatprep.subr.mxu0 0.0
      %1186 = vmatpush1.msra.mxu0 0.0
      %1187 = vmatprep.subr.mxu0 0.0
      %1188 = vmatpush1.msra.mxu0 0.0
      %1189 = vmatprep.subr.mxu0 0.0
      %1190 = vmatpush1.msra.mxu0 0.0
      %1191 = vmatprep.subr.mxu0 0.0
      %1192 = vmatpush1.msra.mxu0 0.0
      %1193 = vmatprep.subr.mxu0 0.0
      %1194 = vmatpush1.msra.mxu0 0.0
      %1195 = vmatprep.subr.mxu0 0.0
      %1196 = vmatpush1.msra.mxu0 0.0
      %1197 = vmatprep.subr.mxu0 0.0
      %1198 = vmatpush1.msra.mxu0 0.0
      %1199 = vmatprep.subr.mxu0 0.0
      %1200 = vmatpush1.msra.mxu0 0.0
      %1201 = vmatprep.subr.mxu0 0.0
      %1202 = vmatpush1.msra.mxu0 0.0
      %1203 = vmatprep.subr.mxu0 0.0
      %1204 = vmatpush1.msra.mxu0 0.0
      %1205 = vmatprep.subr.mxu0 0.0
      %1206 = vmatpush1.msra.mxu0 0.0
      %1207 = vmatprep.subr.mxu0 0.0
      %1208 = vmatpush1.msra.mxu0 0.0
      %1209 = vmatprep.subr.mxu0 0.0
      %1210 = vmatpush1.msra.mxu0 0.0
      %1211 = vmatprep.subr.mxu0 0.0
      %1212 = vmatpush1.msra.mxu0 0.0
      %1213 = vmatprep.subr.mxu0 0.0
      %1214 = vmatpush1.msra.mxu0 0.0
      %1215 = vmatprep.subr.mxu0 0.0
      %1216 = vmatpush1.msra.mxu0 0.0
      %1217 = vmatprep.subr.mxu0 0.0
      %1218 = vmatpush1.msra.mxu0 0.0
      %1219 = vmatprep.subr.mxu0 0.0
      %1220 = vmatpush1.msra.mxu0 0.0
      %1221 = vmatprep.subr.mxu0 0.0
      %1222 = vmatpush1.msra.mxu0 0.0
      %1223 = vmatprep.subr.mxu0 0.0
      %1224 = vmatpush1.msra.mxu0 0.0
      %1225 = vmatprep.subr.mxu0 0.0
      %1226 = vmatpush1.msra.mxu0 0.0
      %1227 = vmatprep.subr.mxu0 0.0
      %1228 = vmatpush1.msra.mxu0 0.0
      %1229 = vmatprep.subr.mxu0 0.0
      %1230 = vmatpush1.msra.mxu0 0.0
      %1231 = vmatprep.subr.mxu0 0.0
      %1232 = vmatpush1.msra.mxu0 0.0
      %1233 = vmatprep.subr.mxu0 0.0
      %1234 = vmatpush1.msra.mxu0 0.0
      %1235 = vmatprep.subr.mxu0 0.0
      %1236 = vmatpush1.msra.mxu0 0.0
      %1237 = vmatprep.subr.mxu0 0.0
      %1238 = vmatpush1.msra.mxu0 0.0
      %1239 = vmatprep.subr.mxu0 0.0
      %1240 = vmatpush1.msra.mxu0 0.0
      %1241 = vmatprep.subr.mxu0 0.0
      %1242 = vmatpush1.msra.mxu0 0.0
      %1243 = vmatprep.mubr.f32.mxu0 0.0
      %1244 = vmatmul.mubr.f32.gmra.mrb[0].mxu0 %v1177
      %v1245 = vpop.f32.mrb[0].mxu0
      %v1246 = vadd.f32 %v1173, %v1245
      %v1247 = vpop.f32.mrb[0].mxu0
      %1248 = vdwg.mxu0
      %1249 = vrot.lane.b32.xlu0 %v760, 112
      %v1250 = vpop.permute.xlu0 %1249
      %1251 = vrot.lane.b32.xlu0 %v760, 80
      %v1252 = vpop.permute.xlu0 %1251
      %v1253 = vsel %vm770, %v1250, 0
      %v1255 = vsel %vm770, %v1252, 0
      %1257 = vmatprep.subr.mxu0 0.0
      %1258 = vmatpush1.xpose.msra.mxu0 %v1255
      %1259 = vmatprep.subr.mxu0 0.0
      %1260 = vmatpush1.xpose.msra.mxu0 0.0
      %1261 = vmatprep.subr.mxu0 0.0
      %1262 = vmatpush1.xpose.msra.mxu0 0.0
      %1263 = vmatprep.subr.mxu0 0.0
      %1264 = vmatpush1.xpose.msra.mxu0 0.0
      %1265 = vmatprep.subr.mxu0 0.0
      %1266 = vmatpush1.xpose.msra.mxu0 0.0
      %1267 = vmatprep.subr.mxu0 0.0
      %1268 = vmatpush1.xpose.msra.mxu0 0.0
      %1269 = vmatprep.subr.mxu0 0.0
      %1270 = vmatpush1.xpose.msra.mxu0 0.0
      %1271 = vmatprep.subr.mxu0 0.0
      %1272 = vmatpush1.xpose.msra.mxu0 0.0
      %1273 = vmatprep.subr.mxu0 0.0
      %1274 = vmatpush1.xpose.msra.mxu0 0.0
      %1275 = vmatprep.subr.mxu0 0.0
      %1276 = vmatpush1.xpose.msra.mxu0 0.0
      %1277 = vmatprep.subr.mxu0 0.0
      %1278 = vmatpush1.xpose.msra.mxu0 0.0
      %1279 = vmatprep.subr.mxu0 0.0
      %1280 = vmatpush1.xpose.msra.mxu0 0.0
      %1281 = vmatprep.subr.mxu0 0.0
      %1282 = vmatpush1.xpose.msra.mxu0 0.0
      %1283 = vmatprep.subr.mxu0 0.0
      %1284 = vmatpush1.xpose.msra.mxu0 0.0
      %1285 = vmatprep.subr.mxu0 0.0
      %1286 = vmatpush1.xpose.msra.mxu0 0.0
      %1287 = vmatprep.subr.mxu0 0.0
      %1288 = vmatpush1.xpose.msra.mxu0 0.0
      %1289 = vmatprep.subr.mxu0 0.0
      %1290 = vmatpush1.xpose.msra.mxu0 0.0
      %1291 = vmatprep.subr.mxu0 0.0
      %1292 = vmatpush1.xpose.msra.mxu0 0.0
      %1293 = vmatprep.subr.mxu0 0.0
      %1294 = vmatpush1.xpose.msra.mxu0 0.0
      %1295 = vmatprep.subr.mxu0 0.0
      %1296 = vmatpush1.xpose.msra.mxu0 0.0
      %1297 = vmatprep.subr.mxu0 0.0
      %1298 = vmatpush1.xpose.msra.mxu0 0.0
      %1299 = vmatprep.subr.mxu0 0.0
      %1300 = vmatpush1.xpose.msra.mxu0 0.0
      %1301 = vmatprep.subr.mxu0 0.0
      %1302 = vmatpush1.xpose.msra.mxu0 0.0
      %1303 = vmatprep.subr.mxu0 0.0
      %1304 = vmatpush1.xpose.msra.mxu0 0.0
      %1305 = vmatprep.subr.mxu0 0.0
      %1306 = vmatpush1.xpose.msra.mxu0 0.0
      %1307 = vmatprep.subr.mxu0 0.0
      %1308 = vmatpush1.xpose.msra.mxu0 0.0
      %1309 = vmatprep.subr.mxu0 0.0
      %1310 = vmatpush1.xpose.msra.mxu0 0.0
      %1311 = vmatprep.subr.mxu0 0.0
      %1312 = vmatpush1.xpose.msra.mxu0 0.0
      %1313 = vmatprep.subr.mxu0 0.0
      %1314 = vmatpush1.xpose.msra.mxu0 0.0
      %1315 = vmatprep.subr.mxu0 0.0
      %1316 = vmatpush1.xpose.msra.mxu0 0.0
      %1317 = vmatprep.subr.mxu0 0.0
      %1318 = vmatpush1.xpose.msra.mxu0 0.0
      %1319 = vmatprep.subr.mxu0 0.0
      %1320 = vmatpush1.xpose.msra.mxu0 0.0
      %1321 = vmatprep.mubr.f32.mxu0 0.0
      %1322 = vmatmul.mubr.f32.gmra.mrb[0].mxu0 %v1253
      %v1323 = vpop.f32.mrb[0].mxu0
      %v1324 = vadd.f32 0.0, %v1323
      %v1325 = vpop.f32.mrb[0].mxu0
      %1326 = vdwg.mxu0
      %v1327 = vsel %vm770, %v1324, -inf
      %1328 = vmax.xlane.f32.xlu0 %v1327
      %v1329 = vpop.xlane.xlu0 %1328
      %v1330 = vsub.f32 %v1324, %v1329
      %v1331 = vmul.f32 %v1330, 1.442695
      %v1332 = vpow.pop %v1331
      %v1333 = vsel %vm770, %v1332, 0.0
      %1334 = vadd.xlane.f32.xlu0 %v1333
      %v1335 = vpop.xlane.xlu0 %1334
      %v1336 = vrcp.pop %v1335
      %v1337 = vmul.f32 %v1335, %v1336
      %v1338 = vsub.f32 2.0, %v1337
      %v1339 = vmul.f32 %v1336, %v1338
      %v1340 = vmul.f32 %v1332, %v1339
      %1341 = vrot.lane.b32.xlu0 %v760, 48
      %v1342 = vpop.permute.xlu0 %1341
      %v1345 = vsel %vm770, %v1340, 0
      %1347 = vmatprep.subr.mxu0 0.0
      %1348 = vmatpush1.msra.mxu0 %v1342
      %1349 = vmatprep.subr.mxu0 0.0
      %1350 = vmatpush1.msra.mxu0 0.0
      %1351 = vmatprep.subr.mxu0 0.0
      %1352 = vmatpush1.msra.mxu0 0.0
      %1353 = vmatprep.subr.mxu0 0.0
      %1354 = vmatpush1.msra.mxu0 0.0
      %1355 = vmatprep.subr.mxu0 0.0
      %1356 = vmatpush1.msra.mxu0 0.0
      %1357 = vmatprep.subr.mxu0 0.0
      %1358 = vmatpush1.msra.mxu0 0.0
      %1359 = vmatprep.subr.mxu0 0.0
      %1360 = vmatpush1.msra.mxu0 0.0
      %1361 = vmatprep.subr.mxu0 0.0
      %1362 = vmatpush1.msra.mxu0 0.0
      %1363 = vmatprep.subr.mxu0 0.0
      %1364 = vmatpush1.msra.mxu0 0.0
      %1365 = vmatprep.subr.mxu0 0.0
      %1366 = vmatpush1.msra.mxu0 0.0
      %1367 = vmatprep.subr.mxu0 0.0
      %1368 = vmatpush1.msra.mxu0 0.0
      %1369 = vmatprep.subr.mxu0 0.0
      %1370 = vmatpush1.msra.mxu0 0.0
      %1371 = vmatprep.subr.mxu0 0.0
      %1372 = vmatpush1.msra.mxu0 0.0
      %1373 = vmatprep.subr.mxu0 0.0
      %1374 = vmatpush1.msra.mxu0 0.0
      %1375 = vmatprep.subr.mxu0 0.0
      %1376 = vmatpush1.msra.mxu0 0.0
      %1377 = vmatprep.subr.mxu0 0.0
      %1378 = vmatpush1.msra.mxu0 0.0
      %1379 = vmatprep.subr.mxu0 0.0
      %1380 = vmatpush1.msra.mxu0 0.0
      %1381 = vmatprep.subr.mxu0 0.0
      %1382 = vmatpush1.msra.mxu0 0.0
      %1383 = vmatprep.subr.mxu0 0.0
      %1384 = vmatpush1.msra.mxu0 0.0
      %1385 = vmatprep.subr.mxu0 0.0
      %1386 = vmatpush1.msra.mxu0 0.0
      %1387 = vmatprep.subr.mxu0 0.0
      %1388 = vmatpush1.msra.mxu0 0.0
      %1389 = vmatprep.subr.mxu0 0.0
      %1390 = vmatpush1.msra.mxu0 0.0
      %1391 = vmatprep.subr.mxu0 0.0
      %1392 = vmatpush1.msra.mxu0 0.0
      %1393 = vmatprep.subr.mxu0 0.0
      %1394 = vmatpush1.msra.mxu0 0.0
      %1395 = vmatprep.subr.mxu0 0.0
      %1396 = vmatpush1.msra.mxu0 0.0
      %1397 = vmatprep.subr.mxu0 0.0
      %1398 = vmatpush1.msra.mxu0 0.0
      %1399 = vmatprep.subr.mxu0 0.0
      %1400 = vmatpush1.msra.mxu0 0.0
      %1401 = vmatprep.subr.mxu0 0.0
      %1402 = vmatpush1.msra.mxu0 0.0
      %1403 = vmatprep.subr.mxu0 0.0
      %1404 = vmatpush1.msra.mxu0 0.0
      %1405 = vmatprep.subr.mxu0 0.0
      %1406 = vmatpush1.msra.mxu0 0.0
      %1407 = vmatprep.subr.mxu0 0.0
      %1408 = vmatpush1.msra.mxu0 0.0
      %1409 = vmatprep.subr.mxu0 0.0
      %1410 = vmatpush1.msra.mxu0 0.0
      %1411 = vmatprep.mubr.f32.mxu0 0.0
      %1412 = vmatmul.mubr.f32.gmra.mrb[0].mxu0 %v1345
      %v1413 = vpop.f32.mrb[0].mxu0
      %v1414 = vadd.f32 0.0, %v1413
      %v1415 = vpop.f32.mrb[0].mxu0
      %1416 = vdwg.mxu0
      %v1418 = vsel %vm770, %v1414, 0
      %1420 = vmatprep.subr.mxu0 0.0
      %1421 = vmatpush1.msra.mxu0 %v765
      %1422 = vmatprep.subr.mxu0 0.0
      %1423 = vmatpush1.msra.mxu0 0.0
      %1424 = vmatprep.subr.mxu0 0.0
      %1425 = vmatpush1.msra.mxu0 0.0
      %1426 = vmatprep.subr.mxu0 0.0
      %1427 = vmatpush1.msra.mxu0 0.0
      %1428 = vmatprep.subr.mxu0 0.0
      %1429 = vmatpush1.msra.mxu0 0.0
      %1430 = vmatprep.subr.mxu0 0.0
      %1431 = vmatpush1.msra.mxu0 0.0
      %1432 = vmatprep.subr.mxu0 0.0
      %1433 = vmatpush1.msra.mxu0 0.0
      %1434 = vmatprep.subr.mxu0 0.0
      %1435 = vmatpush1.msra.mxu0 0.0
      %1436 = vmatprep.subr.mxu0 0.0
      %1437 = vmatpush1.msra.mxu0 0.0
      %1438 = vmatprep.subr.mxu0 0.0
      %1439 = vmatpush1.msra.mxu0 0.0
      %1440 = vmatprep.subr.mxu0 0.0
      %1441 = vmatpush1.msra.mxu0 0.0
      %1442 = vmatprep.subr.mxu0 0.0
      %1443 = vmatpush1.msra.mxu0 0.0
      %1444 = vmatprep.subr.mxu0 0.0
      %1445 = vmatpush1.msra.mxu0 0.0
      %1446 = vmatprep.subr.mxu0 0.0
      %1447 = vmatpush1.msra.mxu0 0.0
      %1448 = vmatprep.subr.mxu0 0.0
      %1449 = vmatpush1.msra.mxu0 0.0
      %1450 = vmatprep.subr.mxu0 0.0
      %1451 = vmatpush1.msra.mxu0 0.0
      %1452 = vmatprep.subr.mxu0 0.0
      %1453 = vmatpush1.msra.mxu0 0.0
      %1454 = vmatprep.subr.mxu0 0.0
      %1455 = vmatpush1.msra.mxu0 0.0
      %1456 = vmatprep.subr.mxu0 0.0
      %1457 = vmatpush1.msra.mxu0 0.0
      %1458 = vmatprep.subr.mxu0 0.0
      %1459 = vmatpush1.msra.mxu0 0.0
      %1460 = vmatprep.subr.mxu0 0.0
      %1461 = vmatpush1.msra.mxu0 0.0
      %1462 = vmatprep.subr.mxu0 0.0
      %1463 = vmatpush1.msra.mxu0 0.0
      %1464 = vmatprep.subr.mxu0 0.0
      %1465 = vmatpush1.msra.mxu0 0.0
      %1466 = vmatprep.subr.mxu0 0.0
      %1467 = vmatpush1.msra.mxu0 0.0
      %1468 = vmatprep.subr.mxu0 0.0
      %1469 = vmatpush1.msra.mxu0 0.0
      %1470 = vmatprep.subr.mxu0 0.0
      %1471 = vmatpush1.msra.mxu0 0.0
      %1472 = vmatprep.subr.mxu0 0.0
      %1473 = vmatpush1.msra.mxu0 0.0
      %1474 = vmatprep.subr.mxu0 0.0
      %1475 = vmatpush1.msra.mxu0 0.0
      %1476 = vmatprep.subr.mxu0 0.0
      %1477 = vmatpush1.msra.mxu0 0.0
      %1478 = vmatprep.subr.mxu0 0.0
      %1479 = vmatpush1.msra.mxu0 0.0
      %1480 = vmatprep.subr.mxu0 0.0
      %1481 = vmatpush1.msra.mxu0 0.0
      %1482 = vmatprep.subr.mxu0 0.0
      %1483 = vmatpush1.msra.mxu0 0.0
      %1484 = vmatprep.mubr.f32.mxu0 0.0
      %1485 = vmatmul.mubr.f32.gmra.mrb[0].mxu0 %v1418
      %v1486 = vpop.f32.mrb[0].mxu0
      %v1487 = vadd.f32 0.0, %v1486
      %v1488 = vpop.f32.mrb[0].mxu0
      %1489 = vdwg.mxu0
      %v1490 = vadd.f32 %v1246, %v1487
      %1491 = vrot.lane.b32.xlu0 %v760, 104
      %v1492 = vpop.permute.xlu0 %1491
      %1493 = vrot.lane.b32.xlu0 %v760, 72
      %v1494 = vpop.permute.xlu0 %1493
      %v1495 = vsel %vm770, %v1492, 0
      %v1497 = vsel %vm770, %v1494, 0
      %1499 = vmatprep.subr.mxu0 0.0
      %1500 = vmatpush1.xpose.msra.mxu0 %v1497
      %1501 = vmatprep.subr.mxu0 0.0
      %1502 = vmatpush1.xpose.msra.mxu0 0.0
      %1503 = vmatprep.subr.mxu0 0.0
      %1504 = vmatpush1.xpose.msra.mxu0 0.0
      %1505 = vmatprep.subr.mxu0 0.0
      %1506 = vmatpush1.xpose.msra.mxu0 0.0
      %1507 = vmatprep.subr.mxu0 0.0
      %1508 = vmatpush1.xpose.msra.mxu0 0.0
      %1509 = vmatprep.subr.mxu0 0.0
      %1510 = vmatpush1.xpose.msra.mxu0 0.0
      %1511 = vmatprep.subr.mxu0 0.0
      %1512 = vmatpush1.xpose.msra.mxu0 0.0
      %1513 = vmatprep.subr.mxu0 0.0
      %1514 = vmatpush1.xpose.msra.mxu0 0.0
      %1515 = vmatprep.subr.mxu0 0.0
      %1516 = vmatpush1.xpose.msra.mxu0 0.0
      %1517 = vmatprep.subr.mxu0 0.0
      %1518 = vmatpush1.xpose.msra.mxu0 0.0
      %1519 = vmatprep.subr.mxu0 0.0
      %1520 = vmatpush1.xpose.msra.mxu0 0.0
      %1521 = vmatprep.subr.mxu0 0.0
      %1522 = vmatpush1.xpose.msra.mxu0 0.0
      %1523 = vmatprep.subr.mxu0 0.0
      %1524 = vmatpush1.xpose.msra.mxu0 0.0
      %1525 = vmatprep.subr.mxu0 0.0
      %1526 = vmatpush1.xpose.msra.mxu0 0.0
      %1527 = vmatprep.subr.mxu0 0.0
      %1528 = vmatpush1.xpose.msra.mxu0 0.0
      %1529 = vmatprep.subr.mxu0 0.0
      %1530 = vmatpush1.xpose.msra.mxu0 0.0
      %1531 = vmatprep.subr.mxu0 0.0
      %1532 = vmatpush1.xpose.msra.mxu0 0.0
      %1533 = vmatprep.subr.mxu0 0.0
      %1534 = vmatpush1.xpose.msra.mxu0 0.0
      %1535 = vmatprep.subr.mxu0 0.0
      %1536 = vmatpush1.xpose.msra.mxu0 0.0
      %1537 = vmatprep.subr.mxu0 0.0
      %1538 = vmatpush1.xpose.msra.mxu0 0.0
      %1539 = vmatprep.subr.mxu0 0.0
      %1540 = vmatpush1.xpose.msra.mxu0 0.0
      %1541 = vmatprep.subr.mxu0 0.0
      %1542 = vmatpush1.xpose.msra.mxu0 0.0
      %1543 = vmatprep.subr.mxu0 0.0
      %1544 = vmatpush1.xpose.msra.mxu0 0.0
      %1545 = vmatprep.subr.mxu0 0.0
      %1546 = vmatpush1.xpose.msra.mxu0 0.0
      %1547 = vmatprep.subr.mxu0 0.0
      %1548 = vmatpush1.xpose.msra.mxu0 0.0
      %1549 = vmatprep.subr.mxu0 0.0
      %1550 = vmatpush1.xpose.msra.mxu0 0.0
      %1551 = vmatprep.subr.mxu0 0.0
      %1552 = vmatpush1.xpose.msra.mxu0 0.0
      %1553 = vmatprep.subr.mxu0 0.0
      %1554 = vmatpush1.xpose.msra.mxu0 0.0
      %1555 = vmatprep.subr.mxu0 0.0
      %1556 = vmatpush1.xpose.msra.mxu0 0.0
      %1557 = vmatprep.subr.mxu0 0.0
      %1558 = vmatpush1.xpose.msra.mxu0 0.0
      %1559 = vmatprep.subr.mxu0 0.0
      %1560 = vmatpush1.xpose.msra.mxu0 0.0
      %1561 = vmatprep.subr.mxu0 0.0
      %1562 = vmatpush1.xpose.msra.mxu0 0.0
      %1563 = vmatprep.mubr.f32.mxu0 0.0
      %1564 = vmatmul.mubr.f32.gmra.mrb[0].mxu0 %v1495
      %v1565 = vpop.f32.mrb[0].mxu0
      %v1566 = vadd.f32 0.0, %v1565
      %v1567 = vpop.f32.mrb[0].mxu0
      %1568 = vdwg.mxu0
      %v1569 = vsel %vm770, %v1566, -inf
      %1570 = vmax.xlane.f32.xlu0 %v1569
      %v1571 = vpop.xlane.xlu0 %1570
      %v1572 = vsub.f32 %v1566, %v1571
      %v1573 = vmul.f32 %v1572, 1.442695
      %v1574 = vpow.pop %v1573
      %v1575 = vsel %vm770, %v1574, 0.0
      %1576 = vadd.xlane.f32.xlu0 %v1575
      %v1577 = vpop.xlane.xlu0 %1576
      %v1578 = vrcp.pop %v1577
      %v1579 = vmul.f32 %v1577, %v1578
      %v1580 = vsub.f32 2.0, %v1579
      %v1581 = vmul.f32 %v1578, %v1580
      %v1582 = vmul.f32 %v1574, %v1581
      %1583 = vrot.lane.b32.xlu0 %v760, 40
      %v1584 = vpop.permute.xlu0 %1583
      %v1587 = vsel %vm770, %v1582, 0
      %1589 = vmatprep.subr.mxu0 0.0
      %1590 = vmatpush1.msra.mxu0 %v1584
      %1591 = vmatprep.subr.mxu0 0.0
      %1592 = vmatpush1.msra.mxu0 0.0
      %1593 = vmatprep.subr.mxu0 0.0
      %1594 = vmatpush1.msra.mxu0 0.0
      %1595 = vmatprep.subr.mxu0 0.0
      %1596 = vmatpush1.msra.mxu0 0.0
      %1597 = vmatprep.subr.mxu0 0.0
      %1598 = vmatpush1.msra.mxu0 0.0
      %1599 = vmatprep.subr.mxu0 0.0
      %1600 = vmatpush1.msra.mxu0 0.0
      %1601 = vmatprep.subr.mxu0 0.0
      %1602 = vmatpush1.msra.mxu0 0.0
      %1603 = vmatprep.subr.mxu0 0.0
      %1604 = vmatpush1.msra.mxu0 0.0
      %1605 = vmatprep.subr.mxu0 0.0
      %1606 = vmatpush1.msra.mxu0 0.0
      %1607 = vmatprep.subr.mxu0 0.0
      %1608 = vmatpush1.msra.mxu0 0.0
      %1609 = vmatprep.subr.mxu0 0.0
      %1610 = vmatpush1.msra.mxu0 0.0
      %1611 = vmatprep.subr.mxu0 0.0
      %1612 = vmatpush1.msra.mxu0 0.0
      %1613 = vmatprep.subr.mxu0 0.0
      %1614 = vmatpush1.msra.mxu0 0.0
      %1615 = vmatprep.subr.mxu0 0.0
      %1616 = vmatpush1.msra.mxu0 0.0
      %1617 = vmatprep.subr.mxu0 0.0
      %1618 = vmatpush1.msra.mxu0 0.0
      %1619 = vmatprep.subr.mxu0 0.0
      %1620 = vmatpush1.msra.mxu0 0.0
      %1621 = vmatprep.subr.mxu0 0.0
      %1622 = vmatpush1.msra.mxu0 0.0
      %1623 = vmatprep.subr.mxu0 0.0
      %1624 = vmatpush1.msra.mxu0 0.0
      %1625 = vmatprep.subr.mxu0 0.0
      %1626 = vmatpush1.msra.mxu0 0.0
      %1627 = vmatprep.subr.mxu0 0.0
      %1628 = vmatpush1.msra.mxu0 0.0
      %1629 = vmatprep.subr.mxu0 0.0
      %1630 = vmatpush1.msra.mxu0 0.0
      %1631 = vmatprep.subr.mxu0 0.0
      %1632 = vmatpush1.msra.mxu0 0.0
      %1633 = vmatprep.subr.mxu0 0.0
      %1634 = vmatpush1.msra.mxu0 0.0
      %1635 = vmatprep.subr.mxu0 0.0
      %1636 = vmatpush1.msra.mxu0 0.0
      %1637 = vmatprep.subr.mxu0 0.0
      %1638 = vmatpush1.msra.mxu0 0.0
      %1639 = vmatprep.subr.mxu0 0.0
      %1640 = vmatpush1.msra.mxu0 0.0
      %1641 = vmatprep.subr.mxu0 0.0
      %1642 = vmatpush1.msra.mxu0 0.0
      %1643 = vmatprep.subr.mxu0 0.0
      %1644 = vmatpush1.msra.mxu0 0.0
      %1645 = vmatprep.subr.mxu0 0.0
      %1646 = vmatpush1.msra.mxu0 0.0
      %1647 = vmatprep.subr.mxu0 0.0
      %1648 = vmatpush1.msra.mxu0 0.0
      %1649 = vmatprep.subr.mxu0 0.0
      %1650 = vmatpush1.msra.mxu0 0.0
      %1651 = vmatprep.subr.mxu0 0.0
      %1652 = vmatpush1.msra.mxu0 0.0
      %1653 = vmatprep.mubr.f32.mxu0 0.0
      %1654 = vmatmul.mubr.f32.gmra.mrb[0].mxu0 %v1587
      %v1655 = vpop.f32.mrb[0].mxu0
      %v1656 = vadd.f32 0.0, %v1655
      %v1657 = vpop.f32.mrb[0].mxu0
      %1658 = vdwg.mxu0
      %v1660 = vsel %vm770, %v1656, 0
      %1662 = vmatprep.subr.mxu0 0.0
      %1663 = vmatpush1.msra.mxu0 %v766
      %1664 = vmatprep.subr.mxu0 0.0
      %1665 = vmatpush1.msra.mxu0 0.0
      %1666 = vmatprep.subr.mxu0 0.0
      %1667 = vmatpush1.msra.mxu0 0.0
      %1668 = vmatprep.subr.mxu0 0.0
      %1669 = vmatpush1.msra.mxu0 0.0
      %1670 = vmatprep.subr.mxu0 0.0
      %1671 = vmatpush1.msra.mxu0 0.0
      %1672 = vmatprep.subr.mxu0 0.0
      %1673 = vmatpush1.msra.mxu0 0.0
      %1674 = vmatprep.subr.mxu0 0.0
      %1675 = vmatpush1.msra.mxu0 0.0
      %1676 = vmatprep.subr.mxu0 0.0
      %1677 = vmatpush1.msra.mxu0 0.0
      %1678 = vmatprep.subr.mxu0 0.0
      %1679 = vmatpush1.msra.mxu0 0.0
      %1680 = vmatprep.subr.mxu0 0.0
      %1681 = vmatpush1.msra.mxu0 0.0
      %1682 = vmatprep.subr.mxu0 0.0
      %1683 = vmatpush1.msra.mxu0 0.0
      %1684 = vmatprep.subr.mxu0 0.0
      %1685 = vmatpush1.msra.mxu0 0.0
      %1686 = vmatprep.subr.mxu0 0.0
      %1687 = vmatpush1.msra.mxu0 0.0
      %1688 = vmatprep.subr.mxu0 0.0
      %1689 = vmatpush1.msra.mxu0 0.0
      %1690 = vmatprep.subr.mxu0 0.0
      %1691 = vmatpush1.msra.mxu0 0.0
      %1692 = vmatprep.subr.mxu0 0.0
      %1693 = vmatpush1.msra.mxu0 0.0
      %1694 = vmatprep.subr.mxu0 0.0
      %1695 = vmatpush1.msra.mxu0 0.0
      %1696 = vmatprep.subr.mxu0 0.0
      %1697 = vmatpush1.msra.mxu0 0.0
      %1698 = vmatprep.subr.mxu0 0.0
      %1699 = vmatpush1.msra.mxu0 0.0
      %1700 = vmatprep.subr.mxu0 0.0
      %1701 = vmatpush1.msra.mxu0 0.0
      %1702 = vmatprep.subr.mxu0 0.0
      %1703 = vmatpush1.msra.mxu0 0.0
      %1704 = vmatprep.subr.mxu0 0.0
      %1705 = vmatpush1.msra.mxu0 0.0
      %1706 = vmatprep.subr.mxu0 0.0
      %1707 = vmatpush1.msra.mxu0 0.0
      %1708 = vmatprep.subr.mxu0 0.0
      %1709 = vmatpush1.msra.mxu0 0.0
      %1710 = vmatprep.subr.mxu0 0.0
      %1711 = vmatpush1.msra.mxu0 0.0
      %1712 = vmatprep.subr.mxu0 0.0
      %1713 = vmatpush1.msra.mxu0 0.0
      %1714 = vmatprep.subr.mxu0 0.0
      %1715 = vmatpush1.msra.mxu0 0.0
      %1716 = vmatprep.subr.mxu0 0.0
      %1717 = vmatpush1.msra.mxu0 0.0
      %1718 = vmatprep.subr.mxu0 0.0
      %1719 = vmatpush1.msra.mxu0 0.0
      %1720 = vmatprep.subr.mxu0 0.0
      %1721 = vmatpush1.msra.mxu0 0.0
      %1722 = vmatprep.subr.mxu0 0.0
      %1723 = vmatpush1.msra.mxu0 0.0
      %1724 = vmatprep.subr.mxu0 0.0
      %1725 = vmatpush1.msra.mxu0 0.0
      %1726 = vmatprep.mubr.f32.mxu0 0.0
      %1727 = vmatmul.mubr.f32.gmra.mrb[0].mxu0 %v1660
      %v1728 = vpop.f32.mrb[0].mxu0
      %v1729 = vadd.f32 0.0, %v1728
      %v1730 = vpop.f32.mrb[0].mxu0
      %1731 = vdwg.mxu0
      %v1732 = vadd.f32 %v1490, %v1729
      %v1733 = vadd.f32 %v647, %v1732
      %v1734 = vld [vmem:[%s613] sm:$0x1]
      %v1736 = vlaneseq
      %v1737 = vshrl.u32 %v1736, 7
      %v1738 = vsub.s32 0, %v1737
      %v1739 = vrot.slane %v1734, %v1738
      %v1741 = vadd.f32 %v1733, %v1739
      %v1742 = vld [vmem:[%s616] sm:$0x1]
      %v1743 = vld [vmem:[%s619] sm:$0x1]
      %v1744 = vsel %vm650, %v1741, 0.0
      %1745 = vadd.xlane.f32.xlu0 %v1744
      %v1746 = vpop.xlane.xlu0 %1745
      %v1747 = vmul.f32 %v1746, %v654
      %v1748 = vsub.f32 %v1741, %v1747
      %v1749 = vmul.f32 %v1748, %v1748
      %v1750 = vsel %vm650, %v1749, 0.0
      %1751 = vadd.xlane.f32.xlu0 %v1750
      %v1752 = vpop.xlane.xlu0 %1751
      %v1753 = vmul.f32 %v1752, %v654
      %v1754 = vadd.f32 %v1753, 1e-05
      %v1755 = vrsqrt.pop %v1754
      %v1756 = vmul.f32 %v1748, %v1755
      %v1758 = vlaneseq
      %v1759 = vshrl.u32 %v1758, 7
      %v1760 = vsub.s32 0, %v1759
      %v1761 = vrot.slane %v1742, %v1760
      %v1763 = vmul.f32 %v1756, %v1761
      %v1765 = vlaneseq
      %v1766 = vshrl.u32 %v1765, 7
      %v1767 = vsub.s32 0, %v1766
      %v1768 = vrot.slane %v1743, %v1767
      %v1770 = vadd.f32 %v1763, %v1768
      %v1771 = vld [vmem:[%s624] sm:$0xff]
      %v1772 = vld [vmem:[%s624 + $0x8] sm:$0xff]
      %v1773 = vld [vmem:[%s624 + $0x10] sm:$0xff]
      %v1774 = vld [vmem:[%s624 + $0x18] sm:$0xff]
      %v1775 = vld [vmem:[%s627] sm:$0x1]
      %v1777 = vlaneseq
      %v1778 = vshrl.u32 %v1777, 7
      %v1779 = vsub.s32 0, %v1778
      %v1780 = vrot.slane %v1775, %v1779
      %v1783 = vsel %vm650, %v1770, 0
      %1785 = vmatprep.subr.mxu0 0.0
      %1786 = vmatpush1.msra.mxu0 %v1771
      %1787 = vmatprep.subr.mxu0 0.0
      %1788 = vmatpush1.msra.mxu0 %v1772
      %1789 = vmatprep.subr.mxu0 0.0
      %1790 = vmatpush1.msra.mxu0 %v1773
      %1791 = vmatprep.subr.mxu0 0.0
      %1792 = vmatpush1.msra.mxu0 %v1774
      %1793 = vmatprep.subr.mxu0 0.0
      %1794 = vmatpush1.msra.mxu0 0.0
      %1795 = vmatprep.subr.mxu0 0.0
      %1796 = vmatpush1.msra.mxu0 0.0
      %1797 = vmatprep.subr.mxu0 0.0
      %1798 = vmatpush1.msra.mxu0 0.0
      %1799 = vmatprep.subr.mxu0 0.0
      %1800 = vmatpush1.msra.mxu0 0.0
      %1801 = vmatprep.subr.mxu0 0.0
      %1802 = vmatpush1.msra.mxu0 0.0
      %1803 = vmatprep.subr.mxu0 0.0
      %1804 = vmatpush1.msra.mxu0 0.0
      %1805 = vmatprep.subr.mxu0 0.0
      %1806 = vmatpush1.msra.mxu0 0.0
      %1807 = vmatprep.subr.mxu0 0.0
      %1808 = vmatpush1.msra.mxu0 0.0
      %1809 = vmatprep.subr.mxu0 0.0
      %1810 = vmatpush1.msra.mxu0 0.0
      %1811 = vmatprep.subr.mxu0 0.0
      %1812 = vmatpush1.msra.mxu0 0.0
      %1813 = vmatprep.subr.mxu0 0.0
      %1814 = vmatpush1.msra.mxu0 0.0
      %1815 = vmatprep.subr.mxu0 0.0
      %1816 = vmatpush1.msra.mxu0 0.0
      %1817 = vmatprep.subr.mxu0 0.0
      %1818 = vmatpush1.msra.mxu0 0.0
      %1819 = vmatprep.subr.mxu0 0.0
      %1820 = vmatpush1.msra.mxu0 0.0
      %1821 = vmatprep.subr.mxu0 0.0
      %1822 = vmatpush1.msra.mxu0 0.0
      %1823 = vmatprep.subr.mxu0 0.0
      %1824 = vmatpush1.msra.mxu0 0.0
      %1825 = vmatprep.subr.mxu0 0.0
      %1826 = vmatpush1.msra.mxu0 0.0
      %1827 = vmatprep.subr.mxu0 0.0
      %1828 = vmatpush1.msra.mxu0 0.0
      %1829 = vmatprep.subr.mxu0 0.0
      %1830 = vmatpush1.msra.mxu0 0.0
      %1831 = vmatprep.subr.mxu0 0.0
      %1832 = vmatpush1.msra.mxu0 0.0
      %1833 = vmatprep.subr.mxu0 0.0
      %1834 = vmatpush1.msra.mxu0 0.0
      %1835 = vmatprep.subr.mxu0 0.0
      %1836 = vmatpush1.msra.mxu0 0.0
      %1837 = vmatprep.subr.mxu0 0.0
      %1838 = vmatpush1.msra.mxu0 0.0
      %1839 = vmatprep.subr.mxu0 0.0
      %1840 = vmatpush1.msra.mxu0 0.0
      %1841 = vmatprep.subr.mxu0 0.0
      %1842 = vmatpush1.msra.mxu0 0.0
      %1843 = vmatprep.subr.mxu0 0.0
      %1844 = vmatpush1.msra.mxu0 0.0
      %1845 = vmatprep.subr.mxu0 0.0
      %1846 = vmatpush1.msra.mxu0 0.0
      %1847 = vmatprep.subr.mxu0 0.0
      %1848 = vmatpush1.msra.mxu0 0.0
      %1849 = vmatprep.mubr.f32.mxu0 0.0
      %1850 = vmatmul.mubr.f32.gmra.mrb[0].mxu0 %v1783
      %v1851 = vpop.f32.mrb[0].mxu0
      %v1852 = vadd.f32 %v1780, %v1851
      %v1853 = vpop.f32.mrb[0].mxu0
      %1854 = vdwg.mxu0
      %v1855 = vmul.f32 %v1852, 1.702
      %v1856 = vxor.u32 %v1855, 2147483648
      %v1857 = vmul.f32 %v1856, 1.442695
      %v1858 = vpow.pop %v1857
      %v1859 = vadd.f32 %v1858, 1.0
      %v1860 = vrcp.pop %v1859
      %v1861 = vmul.f32 1.0, %v1860
      %v1862 = vmul.f32 %v1852, %v1861
      %v1863 = vld [vmem:[%s632] sm:$0xff]
      %v1864 = vld [vmem:[%s632 + $0x8] sm:$0xff]
      %v1865 = vld [vmem:[%s632 + $0x10] sm:$0xff]
      %v1866 = vld [vmem:[%s632 + $0x18] sm:$0xff]
      %v1867 = vld [vmem:[%s632 + $0x20] sm:$0xff]
      %v1868 = vld [vmem:[%s632 + $0x28] sm:$0xff]
      %v1869 = vld [vmem:[%s632 + $0x30] sm:$0xff]
      %v1870 = vld [vmem:[%s632 + $0x38] sm:$0xff]
      %v1871 = vld [vmem:[%s632 + $0x40] sm:$0xff]
      %v1872 = vld [vmem:[%s632 + $0x48] sm:$0xff]
      %v1873 = vld [vmem:[%s632 + $0x50] sm:$0xff]
      %v1874 = vld [vmem:[%s632 + $0x58] sm:$0xff]
      %v1875 = vld [vmem:[%s632 + $0x60] sm:$0xff]
      %v1876 = vld [vmem:[%s632 + $0x68] sm:$0xff]
      %v1877 = vld [vmem:[%s632 + $0x70] sm:$0xff]
      %v1878 = vld [vmem:[%s632 + $0x78] sm:$0xff]
      %v1879 = vld [vmem:[%s635] sm:$0x1]
      %v1881 = vlaneseq
      %v1882 = vshrl.u32 %v1881, 7
      %v1883 = vsub.s32 0, %v1882
      %v1884 = vrot.slane %v1879, %v1883
      %1886 = vmatprep.subr.mxu0 0.0
      %1887 = vmatpush1.msra.mxu0 %v1863
      %1888 = vmatprep.subr.mxu0 0.0
      %1889 = vmatpush1.msra.mxu0 %v1864
      %1890 = vmatprep.subr.mxu0 0.0
      %1891 = vmatpush1.msra.mxu0 %v1865
      %1892 = vmatprep.subr.mxu0 0.0
      %1893 = vmatpush1.msra.mxu0 %v1866
      %1894 = vmatprep.subr.mxu0 0.0
      %1895 = vmatpush1.msra.mxu0 %v1867
      %1896 = vmatprep.subr.mxu0 0.0
      %1897 = vmatpush1.msra.mxu0 %v1868
      %1898 = vmatprep.subr.mxu0 0.0
      %1899 = vmatpush1.msra.mxu0 %v1869
      %1900 = vmatprep.subr.mxu0 0.0
      %1901 = vmatpush1.msra.mxu0 %v1870
      %1902 = vmatprep.subr.mxu0 0.0
      %1903 = vmatpush1.msra.mxu0 %v1871
      %1904 = vmatprep.subr.mxu0 0.0
      %1905 = vmatpush1.msra.mxu0 %v1872
      %1906 = vmatprep.subr.mxu0 0.0
      %1907 = vmatpush1.msra.mxu0 %v1873
      %1908 = vmatprep.subr.mxu0 0.0
      %1909 = vmatpush1.msra.mxu0 %v1874
      %1910 = vmatprep.subr.mxu0 0.0
      %1911 = vmatpush1.msra.mxu0 %v1875
      %1912 = vmatprep.subr.mxu0 0.0
      %1913 = vmatpush1.msra.mxu0 %v1876
      %1914 = vmatprep.subr.mxu0 0.0
      %1915 = vmatpush1.msra.mxu0 %v1877
      %1916 = vmatprep.subr.mxu0 0.0
      %1917 = vmatpush1.msra.mxu0 %v1878
      %1918 = vmatprep.subr.mxu0 0.0
      %1919 = vmatpush1.msra.mxu0 0.0
      %1920 = vmatprep.subr.mxu0 0.0
      %1921 = vmatpush1.msra.mxu0 0.0
      %1922 = vmatprep.subr.mxu0 0.0
      %1923 = vmatpush1.msra.mxu0 0.0
      %1924 = vmatprep.subr.mxu0 0.0
      %1925 = vmatpush1.msra.mxu0 0.0
      %1926 = vmatprep.subr.mxu0 0.0
      %1927 = vmatpush1.msra.mxu0 0.0
      %1928 = vmatprep.subr.mxu0 0.0
      %1929 = vmatpush1.msra.mxu0 0.0
      %1930 = vmatprep.subr.mxu0 0.0
      %1931 = vmatpush1.msra.mxu0 0.0
      %1932 = vmatprep.subr.mxu0 0.0
      %1933 = vmatpush1.msra.mxu0 0.0
      %1934 = vmatprep.subr.mxu0 0.0
      %1935 = vmatpush1.msra.mxu0 0.0
      %1936 = vmatprep.subr.mxu0 0.0
      %1937 = vmatpush1.msra.mxu0 0.0
      %1938 = vmatprep.subr.mxu0 0.0
      %1939 = vmatpush1.msra.mxu0 0.0
      %1940 = vmatprep.subr.mxu0 0.0
      %1941 = vmatpush1.msra.mxu0 0.0
      %1942 = vmatprep.subr.mxu0 0.0
      %1943 = vmatpush1.msra.mxu0 0.0
      %1944 = vmatprep.subr.mxu0 0.0
      %1945 = vmatpush1.msra.mxu0 0.0
      %1946 = vmatprep.subr.mxu0 0.0
      %1947 = vmatpush1.msra.mxu0 0.0
      %1948 = vmatprep.subr.mxu0 0.0
      %1949 = vmatpush1.msra.mxu0 0.0
      %1950 = vmatprep.mubr.f32.mxu0 0.0
      %1951 = vmatmul.mubr.f32.gmra.mrb[0].mxu0 %v1862
      %v1952 = vpop.f32.mrb[0].mxu0
      %v1953 = vadd.f32 %v1884, %v1952
      %v1954 = vpop.f32.mrb[0].mxu0
      %1955 = vdwg.mxu0
      %v1956 = vadd.f32 %v1741, %v1953
      %1957 = vst.msk [vmem:[%s639] sm:$0xff] %vm650, %v1956
      %p1958 = scmp.lt.s32.totalorder %s28, 1
      %s1959 = scalar_select %p1958, %s28, 1
      %s1960 = smul.addr %s1959, 8
      %s1961 = scalar_lea.vmem %s13, %s1960
      // Predicated region
      $region77: #{custom_transformer_forward.1} parent=71 // pred_check
        %p1962 = pneg %p392
      $region78: #{custom_transformer_forward.1} parent=71 // pred_check_branch
        %1964 = sbr.rel (%p1962) target = $region80
      $region79: #{custom_transformer_forward.1} parent=71 // pred_region
        _
      $region80: #{custom_transformer_forward.1} parent=71 // pred_fallthru
        _
    $region72: #{custom_transformer_forward.1} parent=5 // pred_fallthru
      _
    %p1965 = scmp.le.s32.totalorder 2, %s19
    // Predicated region
    $region81: #{custom_transformer_forward.1} parent=5 // pred_check
      %p1966 = pneg %p1965
    $region82: #{custom_transformer_forward.1} parent=5 // pred_check_branch
      %1968 = sbr.rel (%p1966) target = $region84
    $region83: #{custom_transformer_forward.1} parent=5 // pred_region
      %s1969 = ssub.s32 %s19, 2
      // Predicated region
      $region85: #{custom_transformer_forward.1} parent=83 // pred_check
        %p1970 = pneg %p398
      $region86: #{custom_transformer_forward.1} parent=83 // pred_check_branch
        %1972 = sbr.rel (%p1970) target = $region88
      $region87: #{custom_transformer_forward.1} parent=83 // pred_region
        %p1973 = scmp.lt.s32.totalorder %s30, 1
        %s1974 = scalar_select %p1973, %s30, 1
        %s1975 = smul.addr %s1974, 8
        %s1976 = scalar_lea.vmem %s13, %s1975
      $region88: #{custom_transformer_forward.1} parent=83 // pred_fallthru
        _
    $region84: #{custom_transformer_forward.1} parent=5 // pred_fallthru
      _
  $region6: #{custom_transformer_forward.1} parent=0 // loop_footer
    %s23 = sadd.s32 1, %s19
  $region7: #{custom_transformer_forward.1} parent=0 // loop_footer_branch
    %18 = sbr.rel target = $region3
  $region8: #{custom_transformer_forward.1} parent=0 // loop_exit
    _

</llo_original>
